<compile_context>
chip_gen: v7x
topology: tpu7x:2x2x1
jax: 0.10.0
libtpu: 0.0.40
codegen_flags: <defaults>
</compile_context>

<pallas_src>
import numpy as np
import jax
import jax.numpy as jnp
from jax.experimental import pallas as pl
from jax.experimental.pallas import tpu as pltpu


# -----------------------------------------------------------------------------
# Fused kernel: one grid step = one group of whole graphs, everything in VMEM.
# -----------------------------------------------------------------------------
def _fused_kernel(xph_ref, w1_ref, b1_ref, w2_ref, b2_ref,
                  mprev_ref, mnext_ref, d0_ref, cup_ref, cdn_ref,
                  g1w_ref, g1b_ref, g2w_ref, g2b_ref,
                  fcw_ref, fcb_ref, o_ref):
    f32 = jnp.float32
    bf16 = jnp.bfloat16

    xall = xph_ref[0]                 # (Rt, 4*Cin): row m = [x[4m]|x[4m+1]|x[4m+2]|x[4m+3]]
    rt = xall.shape[0]                # rows per tile = graphs_per_tile * nodes_per_graph
    cin = xall.shape[1] // 4
    bt = o_ref.shape[1]               # graphs per tile
    nn = rt // bt                     # nodes per graph

    mprev = mprev_ref[...]            # (Rt,1): 0 at first node of each graph
    mnext = mnext_ref[...]            # (Rt,1): 0 at last node of each graph

    def shift_prev(v):                # v at position m-1 within the graph (zero padding)
        return pltpu.roll(v, 1, 0) * mprev

    def shift_next(v):                # v at position m+1 within the graph (zero padding)
        return pltpu.roll(v, rt - 1, 0) * mnext

    def conv_relu(prev_v, cur_v, next_v, w_ref, b_ref):
        # kernel-size-3 "same" conv; w rows = [prev-tap | center-tap | next-tap] blocks
        if cur_v.shape[1] == 1:       # Cin==1: VPU broadcast FMAs, keep the MXU free
            y = (prev_v * w_ref[0:1, :] + cur_v * w_ref[1:2, :]
                 + next_v * w_ref[2:3, :])
        else:                         # one im2col MXU dot (K = 3 * channels)
            xcat = jnp.concatenate([prev_v, cur_v, next_v], axis=-1)
            y = jnp.dot(xcat, w_ref[...], preferred_element_type=f32)
        return jnp.maximum(y + b_ref[...], 0.0)

    # Stride-4 phases of the input sequence (lane slices of the packed block).
    x0 = xall[:, 0 * cin:1 * cin]
    x1 = xall[:, 1 * cin:2 * cin]
    x2 = xall[:, 2 * cin:3 * cin]
    x3 = xall[:, 3 * cin:4 * cin]

    # ---- Conv1(k=3,pad=1) + ReLU + MaxPool1d(2), evaluated per output phase --
    a0 = conv_relu(shift_prev(x3), x0, x1, w1_ref, b1_ref)   # y1[4m]
    a1 = conv_relu(x0, x1, x2, w1_ref, b1_ref)               # y1[4m+1]
    a2 = conv_relu(x1, x2, x3, w1_ref, b1_ref)               # y1[4m+2]
    a3 = conv_relu(x2, x3, shift_next(x0), w1_ref, b1_ref)   # y1[4m+3]
    pe = jnp.maximum(a0, a1)          # y1p[2m]   (pool1 output, even phase)
    po = jnp.maximum(a2, a3)          # y1p[2m+1] (pool1 output, odd phase)

    # ---- Conv2(k=3,pad=1) + ReLU + MaxPool1d(2) -> node features -------------
    ze = conv_relu(shift_prev(po), pe, po, w2_ref, b2_ref)   # z[2m]
    zo = conv_relu(pe, po, shift_next(pe), w2_ref, b2_ref)   # z[2m+1]
    xn = jnp.maximum(ze, zo)          # (Rt, F) node features

    # ---- GCN x2: A_norm @ h == d0*h + cup*h[i-1] + cdn*h[i+1] -----------------
    # (exact D^-1/2 (A+I) D^-1/2 chain semantics; coefficients are zero at graph
    #  boundaries so roll wraparound is harmless)
    d0, cup, cdn = d0_ref[...], cup_ref[...], cdn_ref[...]

    def aggregate(h):
        return (d0 * h + cup * pltpu.roll(h, 1, 0)
                + cdn * pltpu.roll(h, rt - 1, 0))

    h = jnp.dot(xn.astype(bf16), g1w_ref[...], preferred_element_type=f32)
    h = jnp.maximum(aggregate(h) + g1b_ref[...], 0.0)
    # TODO(synk): dropout is identity (eval mode) — no RNG masking applied.
    h = jnp.dot(h.astype(bf16), g2w_ref[...], preferred_element_type=f32)
    h = jnp.maximum(aggregate(h) + g2b_ref[...], 0.0)

    # ---- global_mean_pool (per graph) + final Linear (lane-dense logits) ------
    g = jnp.sum(h.reshape(bt, nn, h.shape[1]), axis=1) * (1.0 / nn)    # (Bt, H)
    logits = (jnp.dot(g.astype(bf16), fcw_ref[...], preferred_element_type=f32)
              + fcb_ref[...])                                           # (Bt, NCp)
    o_ref[0] = logits


# -----------------------------------------------------------------------------
# Host-side static tables (depend only on graphs_per_tile / seq_len).
# Same tables serve every grid step (all graphs share the chain structure).
# -----------------------------------------------------------------------------
def build_static_tables(graphs_per_tile, seq_len):
    assert seq_len % 4 == 0, "seq_len must be divisible by 4 (two MaxPool(2))"
    nn = seq_len // 4                      # nodes per graph
    rt = graphs_per_tile * nn              # rows per grid tile
    pos = np.arange(rt) % nn

    mprev = (pos >= 1).astype(np.float32)[:, None]
    mnext = (pos <= nn - 2).astype(np.float32)[:, None]

    # GCN normalization for the bidirectional chain graph + self loops.
    deg = np.full(rt, 3.0, np.float32)
    deg[pos == 0] -= 1.0
    deg[pos == nn - 1] -= 1.0
    deg = np.maximum(deg, 1.0)
    dinv = (1.0 / np.sqrt(deg)).astype(np.float32)
    d0 = (dinv * dinv)[:, None].astype(np.float32)
    cup = np.where(pos >= 1, dinv * np.roll(dinv, 1), 0.0)[:, None].astype(np.float32)
    cdn = np.where(pos <= nn - 2, dinv * np.roll(dinv, -1), 0.0)[:, None].astype(np.float32)

    tables = dict(mprev=mprev, mnext=mnext, d0=d0, cup=cup, cdn=cdn)
    return {k: jnp.asarray(v) for k, v in tables.items()}


def init_params(key, input_channels, cnn_filters, gnn_hidden, num_classes):
    ks = jax.random.split(key, 10)

    def nrm(k, shape, fan_in, dtype=jnp.float32):
        return (jax.random.normal(k, shape, jnp.float32)
                / np.sqrt(max(fan_in, 1))).astype(dtype)

    return {
        # conv weights pre-reshaped to (3*Cin, Cout): row blocks = taps
        # [x[i-1] | x[i] | x[i+1]], matching the in-kernel tap order.
        "conv1_w": nrm(ks[0], (3 * input_channels, cnn_filters), 3 * input_channels),
        "conv1_b": nrm(ks[1], (1, cnn_filters), 3 * input_channels),
        "conv2_w": nrm(ks[2], (3 * cnn_filters, cnn_filters), 3 * cnn_filters),
        "conv2_b": nrm(ks[3], (1, cnn_filters), 3 * cnn_filters),
        # GCN / FC matmul weights stored bf16 (f32 accumulation in-kernel).
        "gcn1_w": nrm(ks[4], (cnn_filters, gnn_hidden), cnn_filters, jnp.bfloat16),
        "gcn1_b": nrm(ks[5], (1, gnn_hidden), cnn_filters),
        "gcn2_w": nrm(ks[6], (gnn_hidden, gnn_hidden), gnn_hidden, jnp.bfloat16),
        "gcn2_b": nrm(ks[7], (1, gnn_hidden), gnn_hidden),
        "fc_w": nrm(ks[8], (gnn_hidden, num_classes), gnn_hidden, jnp.bfloat16),
        "fc_b": nrm(ks[9], (1, num_classes), gnn_hidden),
    }


# -----------------------------------------------------------------------------
# Forward: phase-pack reshape on host + one gridded fused kernel.
# -----------------------------------------------------------------------------
def cnn_gnn_forward(params, tables, x_ncl):
    """x_ncl: (B, Cin, L) PyTorch NCL layout. Returns (B, num_classes)."""
    B, Cin, L = x_ncl.shape
    assert L % 4 == 0, "seq_len must be divisible by 4 (two MaxPool(2))"
    nn_ = L // 4                               # nodes per graph
    rt = tables["mprev"].shape[0]              # rows per grid tile
    assert rt % nn_ == 0
    bt = rt // nn_                             # graphs per grid tile
    assert B % bt == 0, "batch must be divisible by graphs_per_tile"
    grid_n = B // bt

    nc = params["fc_b"].shape[1]
    ncp = ((nc + 127) // 128) * 128            # lane-dense padded logits width
    fcw = jnp.pad(params["fc_w"], ((0, 0), (0, ncp - nc)))
    fcb = jnp.pad(params["fc_b"], ((0, 0), (0, ncp - nc)))

    # Phase-pack the input: (B, Cin, L) -> (grid, Bt*Nn, 4*Cin); row m of each
    # graph holds [x[4m] | x[4m+1] | x[4m+2] | x[4m+3]] (pure reshape: HBM
    # traffic == input bytes, no 3x im2col expansion).
    x = jnp.transpose(x_ncl, (0, 2, 1)).astype(jnp.float32)       # (B, L, Cin)
    xph = x.reshape(grid_n, rt, 4 * Cin)

    operands = (xph,
                params["conv1_w"], params["conv1_b"],
                params["conv2_w"], params["conv2_b"],
                tables["mprev"], tables["mnext"],
                tables["d0"], tables["cup"], tables["cdn"],
                params["gcn1_w"], params["gcn1_b"],
                params["gcn2_w"], params["gcn2_b"],
                fcw, fcb)

    def pinned(arr):
        # full-array block + constant index_map -> stays VMEM-resident across steps
        return pl.BlockSpec(arr.shape, lambda i: (0,) * arr.ndim)

    in_specs = ([pl.BlockSpec((1, rt, 4 * Cin), lambda i: (i, 0, 0))]
                + [pinned(op) for op in operands[1:]])
    out_specs = pl.BlockSpec((1, bt, ncp), lambda i: (i, 0, 0))

    out = pl.pallas_call(
        _fused_kernel,
        out_shape=jax.ShapeDtypeStruct((grid_n, bt, ncp), jnp.float32),
        grid=(grid_n,),
        in_specs=in_specs,
        out_specs=out_specs,
        compiler_params=pltpu.CompilerParams(
            dimension_semantics=("parallel",),      # graphs independent -> megacore
            vmem_limit_bytes=32 * 1024 * 1024),     # explicit budget, fits all TPU gens
    )(*operands)

    return out.reshape(B, ncp)[:, :nc]


if __name__ == "__main__":
    batch_size = 4
    input_channels = 1
    seq_len = 64          # -> 32 after pool1 -> 16 nodes per graph after pool2
    cnn_filters = 8
    gnn_hidden = 64
    num_classes = 2
    graphs_per_tile = 2   # grid = (batch_size // graphs_per_tile,) parallel steps

    key = jax.random.PRNGKey(0)
    k_x, k_p = jax.random.split(key)
    x = jax.random.normal(k_x, (batch_size, input_channels, seq_len),
                          dtype=jnp.float32)
    params = init_params(k_p, input_channels, cnn_filters, gnn_hidden,
                         num_classes)
    tables = build_static_tables(graphs_per_tile, seq_len)

    forward = jax.jit(cnn_gnn_forward)
    out = jax.block_until_ready(forward(params, tables, x))
    assert out.shape == (batch_size, num_classes)
    print("KERNEL_OK")
</pallas_src>

<mosaic_0001>
module attributes {stable_mosaic.version = 11 : i64} {
  func.func @_fused_kernel(%arg0: i32, %arg1: memref<1x32x4xf32, #tpu.memory_space<vmem>>, %arg2: memref<3x8xf32, #tpu.memory_space<vmem>>, %arg3: memref<1x8xf32, #tpu.memory_space<vmem>>, %arg4: memref<24x8xf32, #tpu.memory_space<vmem>>, %arg5: memref<1x8xf32, #tpu.memory_space<vmem>>, %arg6: memref<32x1xf32, #tpu.memory_space<vmem>>, %arg7: memref<32x1xf32, #tpu.memory_space<vmem>>, %arg8: memref<32x1xf32, #tpu.memory_space<vmem>>, %arg9: memref<32x1xf32, #tpu.memory_space<vmem>>, %arg10: memref<32x1xf32, #tpu.memory_space<vmem>>, %arg11: memref<8x64xbf16, #tpu.memory_space<vmem>>, %arg12: memref<1x64xf32, #tpu.memory_space<vmem>>, %arg13: memref<64x64xbf16, #tpu.memory_space<vmem>>, %arg14: memref<1x64xf32, #tpu.memory_space<vmem>>, %arg15: memref<64x128xbf16, #tpu.memory_space<vmem>>, %arg16: memref<1x128xf32, #tpu.memory_space<vmem>>, %arg17: memref<1x2x128xf32, #tpu.memory_space<vmem>>) attributes {dimension_semantics = [#tpu.dimension_semantics<parallel>], iteration_bounds = array<i64: 2>, scalar_prefetch = 0 : i64, scratch_operands = 0 : i64, tpu.core_type = #tpu.core_type<tc>, window_params = [{transform_indices = @transform_0, window_bounds = array<i64: 1, 32, 4>}, {pipeline_mode = #tpu.pipeline_mode<synchronous>, transform_indices = @transform_1, window_bounds = array<i64: 3, 8>}, {pipeline_mode = #tpu.pipeline_mode<synchronous>, transform_indices = @transform_2, window_bounds = array<i64: 1, 8>}, {pipeline_mode = #tpu.pipeline_mode<synchronous>, transform_indices = @transform_3, window_bounds = array<i64: 24, 8>}, {pipeline_mode = #tpu.pipeline_mode<synchronous>, transform_indices = @transform_4, window_bounds = array<i64: 1, 8>}, {pipeline_mode = #tpu.pipeline_mode<synchronous>, transform_indices = @transform_5, window_bounds = array<i64: 32, 1>}, {pipeline_mode = #tpu.pipeline_mode<synchronous>, transform_indices = @transform_6, window_bounds = array<i64: 32, 1>}, {pipeline_mode = #tpu.pipeline_mode<synchronous>, transform_indices = @transform_7, window_bounds = array<i64: 32, 1>}, {pipeline_mode = #tpu.pipeline_mode<synchronous>, transform_indices = @transform_8, window_bounds = array<i64: 32, 1>}, {pipeline_mode = #tpu.pipeline_mode<synchronous>, transform_indices = @transform_9, window_bounds = array<i64: 32, 1>}, {pipeline_mode = #tpu.pipeline_mode<synchronous>, transform_indices = @transform_10, window_bounds = array<i64: 8, 64>}, {pipeline_mode = #tpu.pipeline_mode<synchronous>, transform_indices = @transform_11, window_bounds = array<i64: 1, 64>}, {pipeline_mode = #tpu.pipeline_mode<synchronous>, transform_indices = @transform_12, window_bounds = array<i64: 64, 64>}, {pipeline_mode = #tpu.pipeline_mode<synchronous>, transform_indices = @transform_13, window_bounds = array<i64: 1, 64>}, {pipeline_mode = #tpu.pipeline_mode<synchronous>, transform_indices = @transform_14, window_bounds = array<i64: 64, 128>}, {pipeline_mode = #tpu.pipeline_mode<synchronous>, transform_indices = @transform_15, window_bounds = array<i64: 1, 128>}, {transform_indices = @transform_16, window_bounds = array<i64: 1, 2, 128>}]} {
    %c0 = arith.constant 0 : index
    %c0_0 = arith.constant 0 : index
    %c0_1 = arith.constant 0 : index
    %0 = vector.load %arg1[%c0, %c0_0, %c0_1] : memref<1x32x4xf32, #tpu.memory_space<vmem>>, vector<1x32x4xf32>
    %1 = vector.shape_cast %0 : vector<1x32x4xf32> to vector<32x4xf32>
    %c0_2 = arith.constant 0 : index
    %c0_3 = arith.constant 0 : index
    %2 = vector.load %arg6[%c0_2, %c0_3] : memref<32x1xf32, #tpu.memory_space<vmem>>, vector<32x1xf32>
    %c0_4 = arith.constant 0 : index
    %c0_5 = arith.constant 0 : index
    %3 = vector.load %arg7[%c0_4, %c0_5] : memref<32x1xf32, #tpu.memory_space<vmem>>, vector<32x1xf32>
    %4 = vector.extract_strided_slice %1 {offsets = [0, 0], sizes = [32, 1], strides = [1, 1]} : vector<32x4xf32> to vector<32x1xf32>
    %5 = vector.extract_strided_slice %1 {offsets = [0, 1], sizes = [32, 1], strides = [1, 1]} : vector<32x4xf32> to vector<32x1xf32>
    %6 = vector.extract_strided_slice %1 {offsets = [0, 2], sizes = [32, 1], strides = [1, 1]} : vector<32x4xf32> to vector<32x1xf32>
    %7 = vector.extract_strided_slice %1 {offsets = [0, 3], sizes = [32, 1], strides = [1, 1]} : vector<32x4xf32> to vector<32x1xf32>
    %c1_i32 = arith.constant 1 : i32
    %8 = tpu.dynamic_rotate %7 by %c1_i32 dim 0 : vector<32x1xf32>, i32 -> vector<32x1xf32>
    %9 = arith.mulf %8, %2 : vector<32x1xf32>
    %c0_6 = arith.constant 0 : index
    %c0_7 = arith.constant 0 : index
    %10 = vector.load %arg2[%c0_6, %c0_7] : memref<3x8xf32, #tpu.memory_space<vmem>>, vector<1x8xf32>
    %11 = vector.broadcast %9 : vector<32x1xf32> to vector<32x8xf32>
    %12 = vector.broadcast %10 : vector<1x8xf32> to vector<32x8xf32>
    %13 = arith.mulf %11, %12 : vector<32x8xf32>
    %c1 = arith.constant 1 : index
    %c0_8 = arith.constant 0 : index
    %14 = vector.load %arg2[%c1, %c0_8] : memref<3x8xf32, #tpu.memory_space<vmem>>, vector<1x8xf32>
    %15 = vector.broadcast %4 : vector<32x1xf32> to vector<32x8xf32>
    %16 = vector.broadcast %14 : vector<1x8xf32> to vector<32x8xf32>
    %17 = arith.mulf %15, %16 : vector<32x8xf32>
    %18 = arith.addf %13, %17 : vector<32x8xf32>
    %c2 = arith.constant 2 : index
    %c0_9 = arith.constant 0 : index
    %19 = vector.load %arg2[%c2, %c0_9] : memref<3x8xf32, #tpu.memory_space<vmem>>, vector<1x8xf32>
    %20 = vector.broadcast %5 : vector<32x1xf32> to vector<32x8xf32>
    %21 = vector.broadcast %19 : vector<1x8xf32> to vector<32x8xf32>
    %22 = arith.mulf %20, %21 : vector<32x8xf32>
    %23 = arith.addf %18, %22 : vector<32x8xf32>
    %c0_10 = arith.constant 0 : index
    %c0_11 = arith.constant 0 : index
    %24 = vector.load %arg3[%c0_10, %c0_11] : memref<1x8xf32, #tpu.memory_space<vmem>>, vector<1x8xf32>
    %25 = vector.broadcast %24 : vector<1x8xf32> to vector<32x8xf32>
    %26 = arith.addf %23, %25 : vector<32x8xf32>
    %cst = arith.constant 0.000000e+00 : f32
    %27 = vector.broadcast %cst : f32 to vector<32x8xf32>
    %28 = arith.maximumf %26, %27 : vector<32x8xf32>
    %c0_12 = arith.constant 0 : index
    %c0_13 = arith.constant 0 : index
    %29 = vector.load %arg2[%c0_12, %c0_13] : memref<3x8xf32, #tpu.memory_space<vmem>>, vector<1x8xf32>
    %30 = vector.broadcast %4 : vector<32x1xf32> to vector<32x8xf32>
    %31 = vector.broadcast %29 : vector<1x8xf32> to vector<32x8xf32>
    %32 = arith.mulf %30, %31 : vector<32x8xf32>
    %c1_14 = arith.constant 1 : index
    %c0_15 = arith.constant 0 : index
    %33 = vector.load %arg2[%c1_14, %c0_15] : memref<3x8xf32, #tpu.memory_space<vmem>>, vector<1x8xf32>
    %34 = vector.broadcast %5 : vector<32x1xf32> to vector<32x8xf32>
    %35 = vector.broadcast %33 : vector<1x8xf32> to vector<32x8xf32>
    %36 = arith.mulf %34, %35 : vector<32x8xf32>
    %37 = arith.addf %32, %36 : vector<32x8xf32>
    %c2_16 = arith.constant 2 : index
    %c0_17 = arith.constant 0 : index
    %38 = vector.load %arg2[%c2_16, %c0_17] : memref<3x8xf32, #tpu.memory_space<vmem>>, vector<1x8xf32>
    %39 = vector.broadcast %6 : vector<32x1xf32> to vector<32x8xf32>
    %40 = vector.broadcast %38 : vector<1x8xf32> to vector<32x8xf32>
    %41 = arith.mulf %39, %40 : vector<32x8xf32>
    %42 = arith.addf %37, %41 : vector<32x8xf32>
    %c0_18 = arith.constant 0 : index
    %c0_19 = arith.constant 0 : index
    %43 = vector.load %arg3[%c0_18, %c0_19] : memref<1x8xf32, #tpu.memory_space<vmem>>, vector<1x8xf32>
    %44 = vector.broadcast %43 : vector<1x8xf32> to vector<32x8xf32>
    %45 = arith.addf %42, %44 : vector<32x8xf32>
    %cst_20 = arith.constant 0.000000e+00 : f32
    %46 = vector.broadcast %cst_20 : f32 to vector<32x8xf32>
    %47 = arith.maximumf %45, %46 : vector<32x8xf32>
    %c0_21 = arith.constant 0 : index
    %c0_22 = arith.constant 0 : index
    %48 = vector.load %arg2[%c0_21, %c0_22] : memref<3x8xf32, #tpu.memory_space<vmem>>, vector<1x8xf32>
    %49 = vector.broadcast %5 : vector<32x1xf32> to vector<32x8xf32>
    %50 = vector.broadcast %48 : vector<1x8xf32> to vector<32x8xf32>
    %51 = arith.mulf %49, %50 : vector<32x8xf32>
    %c1_23 = arith.constant 1 : index
    %c0_24 = arith.constant 0 : index
    %52 = vector.load %arg2[%c1_23, %c0_24] : memref<3x8xf32, #tpu.memory_space<vmem>>, vector<1x8xf32>
    %53 = vector.broadcast %6 : vector<32x1xf32> to vector<32x8xf32>
    %54 = vector.broadcast %52 : vector<1x8xf32> to vector<32x8xf32>
    %55 = arith.mulf %53, %54 : vector<32x8xf32>
    %56 = arith.addf %51, %55 : vector<32x8xf32>
    %c2_25 = arith.constant 2 : index
    %c0_26 = arith.constant 0 : index
    %57 = vector.load %arg2[%c2_25, %c0_26] : memref<3x8xf32, #tpu.memory_space<vmem>>, vector<1x8xf32>
    %58 = vector.broadcast %7 : vector<32x1xf32> to vector<32x8xf32>
    %59 = vector.broadcast %57 : vector<1x8xf32> to vector<32x8xf32>
    %60 = arith.mulf %58, %59 : vector<32x8xf32>
    %61 = arith.addf %56, %60 : vector<32x8xf32>
    %c0_27 = arith.constant 0 : index
    %c0_28 = arith.constant 0 : index
    %62 = vector.load %arg3[%c0_27, %c0_28] : memref<1x8xf32, #tpu.memory_space<vmem>>, vector<1x8xf32>
    %63 = vector.broadcast %62 : vector<1x8xf32> to vector<32x8xf32>
    %64 = arith.addf %61, %63 : vector<32x8xf32>
    %cst_29 = arith.constant 0.000000e+00 : f32
    %65 = vector.broadcast %cst_29 : f32 to vector<32x8xf32>
    %66 = arith.maximumf %64, %65 : vector<32x8xf32>
    %c31_i32 = arith.constant 31 : i32
    %67 = tpu.dynamic_rotate %4 by %c31_i32 dim 0 : vector<32x1xf32>, i32 -> vector<32x1xf32>
    %68 = arith.mulf %67, %3 : vector<32x1xf32>
    %c0_30 = arith.constant 0 : index
    %c0_31 = arith.constant 0 : index
    %69 = vector.load %arg2[%c0_30, %c0_31] : memref<3x8xf32, #tpu.memory_space<vmem>>, vector<1x8xf32>
    %70 = vector.broadcast %6 : vector<32x1xf32> to vector<32x8xf32>
    %71 = vector.broadcast %69 : vector<1x8xf32> to vector<32x8xf32>
    %72 = arith.mulf %70, %71 : vector<32x8xf32>
    %c1_32 = arith.constant 1 : index
    %c0_33 = arith.constant 0 : index
    %73 = vector.load %arg2[%c1_32, %c0_33] : memref<3x8xf32, #tpu.memory_space<vmem>>, vector<1x8xf32>
    %74 = vector.broadcast %7 : vector<32x1xf32> to vector<32x8xf32>
    %75 = vector.broadcast %73 : vector<1x8xf32> to vector<32x8xf32>
    %76 = arith.mulf %74, %75 : vector<32x8xf32>
    %77 = arith.addf %72, %76 : vector<32x8xf32>
    %c2_34 = arith.constant 2 : index
    %c0_35 = arith.constant 0 : index
    %78 = vector.load %arg2[%c2_34, %c0_35] : memref<3x8xf32, #tpu.memory_space<vmem>>, vector<1x8xf32>
    %79 = vector.broadcast %68 : vector<32x1xf32> to vector<32x8xf32>
    %80 = vector.broadcast %78 : vector<1x8xf32> to vector<32x8xf32>
    %81 = arith.mulf %79, %80 : vector<32x8xf32>
    %82 = arith.addf %77, %81 : vector<32x8xf32>
    %c0_36 = arith.constant 0 : index
    %c0_37 = arith.constant 0 : index
    %83 = vector.load %arg3[%c0_36, %c0_37] : memref<1x8xf32, #tpu.memory_space<vmem>>, vector<1x8xf32>
    %84 = vector.broadcast %83 : vector<1x8xf32> to vector<32x8xf32>
    %85 = arith.addf %82, %84 : vector<32x8xf32>
    %cst_38 = arith.constant 0.000000e+00 : f32
    %86 = vector.broadcast %cst_38 : f32 to vector<32x8xf32>
    %87 = arith.maximumf %85, %86 : vector<32x8xf32>
    %88 = arith.maximumf %28, %47 : vector<32x8xf32>
    %89 = arith.maximumf %66, %87 : vector<32x8xf32>
    %c1_i32_39 = arith.constant 1 : i32
    %90 = tpu.dynamic_rotate %89 by %c1_i32_39 dim 0 : vector<32x8xf32>, i32 -> vector<32x8xf32>
    %91 = vector.broadcast %2 : vector<32x1xf32> to vector<32x8xf32>
    %92 = arith.mulf %90, %91 : vector<32x8xf32>
    %93 = tpu.concatenate %92, %88, %89 in 1 : vector<32x8xf32>, vector<32x8xf32>, vector<32x8xf32> -> vector<32x24xf32>
    %c0_40 = arith.constant 0 : index
    %c0_41 = arith.constant 0 : index
    %94 = vector.load %arg4[%c0_40, %c0_41] : memref<24x8xf32, #tpu.memory_space<vmem>>, vector<24x8xf32>
    %cst_42 = arith.constant dense<0.000000e+00> : vector<32x8xf32>
    %95 = tpu.matmul %93, %94, %cst_42 {dimension_numbers = #tpu.dot_dimension_numbers<[1], [0], [0], [1], [0, 0, 1, 1], [], []>} : vector<32x24xf32>, vector<24x8xf32>, vector<32x8xf32> -> vector<32x8xf32>
    %c0_43 = arith.constant 0 : index
    %c0_44 = arith.constant 0 : index
    %96 = vector.load %arg5[%c0_43, %c0_44] : memref<1x8xf32, #tpu.memory_space<vmem>>, vector<1x8xf32>
    %97 = vector.broadcast %96 : vector<1x8xf32> to vector<32x8xf32>
    %98 = arith.addf %95, %97 : vector<32x8xf32>
    %cst_45 = arith.constant 0.000000e+00 : f32
    %99 = vector.broadcast %cst_45 : f32 to vector<32x8xf32>
    %100 = arith.maximumf %98, %99 : vector<32x8xf32>
    %c31_i32_46 = arith.constant 31 : i32
    %101 = tpu.dynamic_rotate %88 by %c31_i32_46 dim 0 : vector<32x8xf32>, i32 -> vector<32x8xf32>
    %102 = vector.broadcast %3 : vector<32x1xf32> to vector<32x8xf32>
    %103 = arith.mulf %101, %102 : vector<32x8xf32>
    %104 = tpu.concatenate %88, %89, %103 in 1 : vector<32x8xf32>, vector<32x8xf32>, vector<32x8xf32> -> vector<32x24xf32>
    %c0_47 = arith.constant 0 : index
    %c0_48 = arith.constant 0 : index
    %105 = vector.load %arg4[%c0_47, %c0_48] : memref<24x8xf32, #tpu.memory_space<vmem>>, vector<24x8xf32>
    %cst_49 = arith.constant dense<0.000000e+00> : vector<32x8xf32>
    %106 = tpu.matmul %104, %105, %cst_49 {dimension_numbers = #tpu.dot_dimension_numbers<[1], [0], [0], [1], [0, 0, 1, 1], [], []>} : vector<32x24xf32>, vector<24x8xf32>, vector<32x8xf32> -> vector<32x8xf32>
    %c0_50 = arith.constant 0 : index
    %c0_51 = arith.constant 0 : index
    %107 = vector.load %arg5[%c0_50, %c0_51] : memref<1x8xf32, #tpu.memory_space<vmem>>, vector<1x8xf32>
    %108 = vector.broadcast %107 : vector<1x8xf32> to vector<32x8xf32>
    %109 = arith.addf %106, %108 : vector<32x8xf32>
    %cst_52 = arith.constant 0.000000e+00 : f32
    %110 = vector.broadcast %cst_52 : f32 to vector<32x8xf32>
    %111 = arith.maximumf %109, %110 : vector<32x8xf32>
    %112 = arith.maximumf %100, %111 : vector<32x8xf32>
    %c0_53 = arith.constant 0 : index
    %c0_54 = arith.constant 0 : index
    %113 = vector.load %arg8[%c0_53, %c0_54] : memref<32x1xf32, #tpu.memory_space<vmem>>, vector<32x1xf32>
    %c0_55 = arith.constant 0 : index
    %c0_56 = arith.constant 0 : index
    %114 = vector.load %arg9[%c0_55, %c0_56] : memref<32x1xf32, #tpu.memory_space<vmem>>, vector<32x1xf32>
    %c0_57 = arith.constant 0 : index
    %c0_58 = arith.constant 0 : index
    %115 = vector.load %arg10[%c0_57, %c0_58] : memref<32x1xf32, #tpu.memory_space<vmem>>, vector<32x1xf32>
    %116 = arith.truncf %112 : vector<32x8xf32> to vector<32x8xbf16>
    %c0_59 = arith.constant 0 : index
    %c0_60 = arith.constant 0 : index
    %117 = vector.load %arg11[%c0_59, %c0_60] : memref<8x64xbf16, #tpu.memory_space<vmem>>, vector<8x64xbf16>
    %cst_61 = arith.constant dense<0.000000e+00> : vector<32x64xf32>
    %118 = tpu.matmul %116, %117, %cst_61 {dimension_numbers = #tpu.dot_dimension_numbers<[1], [0], [0], [1], [0, 0, 1, 1], [], []>} : vector<32x8xbf16>, vector<8x64xbf16>, vector<32x64xf32> -> vector<32x64xf32>
    %119 = vector.broadcast %113 : vector<32x1xf32> to vector<32x64xf32>
    %120 = arith.mulf %119, %118 : vector<32x64xf32>
    %c1_i32_62 = arith.constant 1 : i32
    %121 = tpu.dynamic_rotate %118 by %c1_i32_62 dim 0 : vector<32x64xf32>, i32 -> vector<32x64xf32>
    %122 = vector.broadcast %114 : vector<32x1xf32> to vector<32x64xf32>
    %123 = arith.mulf %122, %121 : vector<32x64xf32>
    %124 = arith.addf %120, %123 : vector<32x64xf32>
    %c31_i32_63 = arith.constant 31 : i32
    %125 = tpu.dynamic_rotate %118 by %c31_i32_63 dim 0 : vector<32x64xf32>, i32 -> vector<32x64xf32>
    %126 = vector.broadcast %115 : vector<32x1xf32> to vector<32x64xf32>
    %127 = arith.mulf %126, %125 : vector<32x64xf32>
    %128 = arith.addf %124, %127 : vector<32x64xf32>
    %c0_64 = arith.constant 0 : index
    %c0_65 = arith.constant 0 : index
    %129 = vector.load %arg12[%c0_64, %c0_65] : memref<1x64xf32, #tpu.memory_space<vmem>>, vector<1x64xf32>
    %130 = vector.broadcast %129 : vector<1x64xf32> to vector<32x64xf32>
    %131 = arith.addf %128, %130 : vector<32x64xf32>
    %cst_66 = arith.constant 0.000000e+00 : f32
    %132 = vector.broadcast %cst_66 : f32 to vector<32x64xf32>
    %133 = arith.maximumf %131, %132 : vector<32x64xf32>
    %134 = arith.truncf %133 : vector<32x64xf32> to vector<32x64xbf16>
    %c0_67 = arith.constant 0 : index
    %c0_68 = arith.constant 0 : index
    %135 = vector.load %arg13[%c0_67, %c0_68] : memref<64x64xbf16, #tpu.memory_space<vmem>>, vector<64x64xbf16>
    %cst_69 = arith.constant dense<0.000000e+00> : vector<32x64xf32>
    %136 = tpu.matmul %134, %135, %cst_69 {dimension_numbers = #tpu.dot_dimension_numbers<[1], [0], [0], [1], [0, 0, 1, 1], [], []>} : vector<32x64xbf16>, vector<64x64xbf16>, vector<32x64xf32> -> vector<32x64xf32>
    %137 = vector.broadcast %113 : vector<32x1xf32> to vector<32x64xf32>
    %138 = arith.mulf %137, %136 : vector<32x64xf32>
    %c1_i32_70 = arith.constant 1 : i32
    %139 = tpu.dynamic_rotate %136 by %c1_i32_70 dim 0 : vector<32x64xf32>, i32 -> vector<32x64xf32>
    %140 = vector.broadcast %114 : vector<32x1xf32> to vector<32x64xf32>
    %141 = arith.mulf %140, %139 : vector<32x64xf32>
    %142 = arith.addf %138, %141 : vector<32x64xf32>
    %c31_i32_71 = arith.constant 31 : i32
    %143 = tpu.dynamic_rotate %136 by %c31_i32_71 dim 0 : vector<32x64xf32>, i32 -> vector<32x64xf32>
    %144 = vector.broadcast %115 : vector<32x1xf32> to vector<32x64xf32>
    %145 = arith.mulf %144, %143 : vector<32x64xf32>
    %146 = arith.addf %142, %145 : vector<32x64xf32>
    %c0_72 = arith.constant 0 : index
    %c0_73 = arith.constant 0 : index
    %147 = vector.load %arg14[%c0_72, %c0_73] : memref<1x64xf32, #tpu.memory_space<vmem>>, vector<1x64xf32>
    %148 = vector.broadcast %147 : vector<1x64xf32> to vector<32x64xf32>
    %149 = arith.addf %146, %148 : vector<32x64xf32>
    %cst_74 = arith.constant 0.000000e+00 : f32
    %150 = vector.broadcast %cst_74 : f32 to vector<32x64xf32>
    %151 = arith.maximumf %149, %150 : vector<32x64xf32>
    %152 = vector.shape_cast %151 : vector<32x64xf32> to vector<2x16x64xf32>
    %cst_75 = arith.constant dense<0.000000e+00> : vector<2x64xf32>
    %153 = vector.multi_reduction <add>, %152, %cst_75 [1] : vector<2x16x64xf32> to vector<2x64xf32>
    %cst_76 = arith.constant 6.250000e-02 : f32
    %154 = vector.broadcast %cst_76 : f32 to vector<2x64xf32>
    %155 = arith.mulf %153, %154 : vector<2x64xf32>
    %156 = arith.truncf %155 : vector<2x64xf32> to vector<2x64xbf16>
    %c0_77 = arith.constant 0 : index
    %c0_78 = arith.constant 0 : index
    %157 = vector.load %arg15[%c0_77, %c0_78] : memref<64x128xbf16, #tpu.memory_space<vmem>>, vector<64x128xbf16>
    %cst_79 = arith.constant dense<0.000000e+00> : vector<2x128xf32>
    %158 = tpu.matmul %156, %157, %cst_79 {dimension_numbers = #tpu.dot_dimension_numbers<[1], [0], [0], [1], [0, 0, 1, 1], [], []>} : vector<2x64xbf16>, vector<64x128xbf16>, vector<2x128xf32> -> vector<2x128xf32>
    %c0_80 = arith.constant 0 : index
    %c0_81 = arith.constant 0 : index
    %159 = vector.load %arg16[%c0_80, %c0_81] : memref<1x128xf32, #tpu.memory_space<vmem>>, vector<1x128xf32>
    %160 = vector.broadcast %159 : vector<1x128xf32> to vector<2x128xf32>
    %161 = arith.addf %158, %160 : vector<2x128xf32>
    %c0_82 = arith.constant 0 : index
    %c0_83 = arith.constant 0 : index
    %c0_84 = arith.constant 0 : index
    %162 = vector.load %arg17[%c0_82, %c0_83, %c0_84] : memref<1x2x128xf32, #tpu.memory_space<vmem>>, vector<1x2x128xf32>
    %163 = vector.shape_cast %162 : vector<1x2x128xf32> to vector<2x128xf32>
    %164 = vector.shape_cast %161 : vector<2x128xf32> to vector<1x2x128xf32>
    tpu.vector_store %arg17[%c0_82, %c0_83, %c0_84], %164 {strides = array<i32>} : memref<1x2x128xf32, #tpu.memory_space<vmem>>, vector<1x2x128xf32>,
    return
  }
  func.func @transform_0(%arg0: i32) -> (i32, i32, i32) {
    %c0_i32 = arith.constant 0 : i32
    %c0_i32_0 = arith.constant 0 : i32
    %c0_i32_1 = arith.constant 0 : i32
    return %arg0, %c0_i32, %c0_i32_0 : i32, i32, i32
  }
  func.func @transform_1(%arg0: i32) -> (i32, i32) {
    %c0_i32 = arith.constant 0 : i32
    %c0_i32_0 = arith.constant 0 : i32
    %c0_i32_1 = arith.constant 0 : i32
    return %c0_i32, %c0_i32_0 : i32, i32
  }
  func.func @transform_2(%arg0: i32) -> (i32, i32) {
    %c0_i32 = arith.constant 0 : i32
    %c0_i32_0 = arith.constant 0 : i32
    %c0_i32_1 = arith.constant 0 : i32
    return %c0_i32, %c0_i32_0 : i32, i32
  }
  func.func @transform_3(%arg0: i32) -> (i32, i32) {
    %c0_i32 = arith.constant 0 : i32
    %c0_i32_0 = arith.constant 0 : i32
    %c0_i32_1 = arith.constant 0 : i32
    return %c0_i32, %c0_i32_0 : i32, i32
  }
  func.func @transform_4(%arg0: i32) -> (i32, i32) {
    %c0_i32 = arith.constant 0 : i32
    %c0_i32_0 = arith.constant 0 : i32
    %c0_i32_1 = arith.constant 0 : i32
    return %c0_i32, %c0_i32_0 : i32, i32
  }
  func.func @transform_5(%arg0: i32) -> (i32, i32) {
    %c0_i32 = arith.constant 0 : i32
    %c0_i32_0 = arith.constant 0 : i32
    %c0_i32_1 = arith.constant 0 : i32
    return %c0_i32, %c0_i32_0 : i32, i32
  }
  func.func @transform_6(%arg0: i32) -> (i32, i32) {
    %c0_i32 = arith.constant 0 : i32
    %c0_i32_0 = arith.constant 0 : i32
    %c0_i32_1 = arith.constant 0 : i32
    return %c0_i32, %c0_i32_0 : i32, i32
  }
  func.func @transform_7(%arg0: i32) -> (i32, i32) {
    %c0_i32 = arith.constant 0 : i32
    %c0_i32_0 = arith.constant 0 : i32
    %c0_i32_1 = arith.constant 0 : i32
    return %c0_i32, %c0_i32_0 : i32, i32
  }
  func.func @transform_8(%arg0: i32) -> (i32, i32) {
    %c0_i32 = arith.constant 0 : i32
    %c0_i32_0 = arith.constant 0 : i32
    %c0_i32_1 = arith.constant 0 : i32
    return %c0_i32, %c0_i32_0 : i32, i32
  }
  func.func @transform_9(%arg0: i32) -> (i32, i32) {
    %c0_i32 = arith.constant 0 : i32
    %c0_i32_0 = arith.constant 0 : i32
    %c0_i32_1 = arith.constant 0 : i32
    return %c0_i32, %c0_i32_0 : i32, i32
  }
  func.func @transform_10(%arg0: i32) -> (i32, i32) {
    %c0_i32 = arith.constant 0 : i32
    %c0_i32_0 = arith.constant 0 : i32
    %c0_i32_1 = arith.constant 0 : i32
    return %c0_i32, %c0_i32_0 : i32, i32
  }
  func.func @transform_11(%arg0: i32) -> (i32, i32) {
    %c0_i32 = arith.constant 0 : i32
    %c0_i32_0 = arith.constant 0 : i32
    %c0_i32_1 = arith.constant 0 : i32
    return %c0_i32, %c0_i32_0 : i32, i32
  }
  func.func @transform_12(%arg0: i32) -> (i32, i32) {
    %c0_i32 = arith.constant 0 : i32
    %c0_i32_0 = arith.constant 0 : i32
    %c0_i32_1 = arith.constant 0 : i32
    return %c0_i32, %c0_i32_0 : i32, i32
  }
  func.func @transform_13(%arg0: i32) -> (i32, i32) {
    %c0_i32 = arith.constant 0 : i32
    %c0_i32_0 = arith.constant 0 : i32
    %c0_i32_1 = arith.constant 0 : i32
    return %c0_i32, %c0_i32_0 : i32, i32
  }
  func.func @transform_14(%arg0: i32) -> (i32, i32) {
    %c0_i32 = arith.constant 0 : i32
    %c0_i32_0 = arith.constant 0 : i32
    %c0_i32_1 = arith.constant 0 : i32
    return %c0_i32, %c0_i32_0 : i32, i32
  }
  func.func @transform_15(%arg0: i32) -> (i32, i32) {
    %c0_i32 = arith.constant 0 : i32
    %c0_i32_0 = arith.constant 0 : i32
    %c0_i32_1 = arith.constant 0 : i32
    return %c0_i32, %c0_i32_0 : i32, i32
  }
  func.func @transform_16(%arg0: i32) -> (i32, i32, i32) {
    %c0_i32 = arith.constant 0 : i32
    %c0_i32_0 = arith.constant 0 : i32
    %c0_i32_1 = arith.constant 0 : i32
    return %arg0, %c0_i32, %c0_i32_0 : i32, i32, i32
  }
}

</mosaic_0001>

<llo_original>
// kernel: cnn_gnn_forward.1
$region0: #{cnn_gnn_forward.1}
  #allocation0 [shape = 'u32[]', space=smem, size = 0x4, offset = 0x4, fixed_abs, tag = 'smem constant byte address 0x4 - core index']
  #allocation1 [shape = 'u32[144,128]{1,0:T(1,128)}', space=vmem, size = 0x12000, scoped, tag = 'internal scratch']
  %s0 = inlined_call_operand.vmem [shape: f32[2,32,4], index: 0, kind: input, shape index: {}]
  %s1 = inlined_call_operand.vmem [shape: f32[3,8], index: 1, kind: input, shape index: {}]
  %s2 = inlined_call_operand.vmem [shape: f32[1,8], index: 2, kind: input, shape index: {}]
  %s3 = inlined_call_operand.vmem [shape: f32[24,8], index: 3, kind: input, shape index: {}]
  %s4 = inlined_call_operand.vmem [shape: f32[1,8], index: 4, kind: input, shape index: {}]
  %s5 = inlined_call_operand.vmem [shape: f32[32,1], index: 5, kind: input, shape index: {}]
  %s6 = inlined_call_operand.vmem [shape: f32[32,1], index: 6, kind: input, shape index: {}]
  %s7 = inlined_call_operand.vmem [shape: f32[32,1], index: 7, kind: input, shape index: {}]
  %s8 = inlined_call_operand.vmem [shape: f32[32,1], index: 8, kind: input, shape index: {}]
  %s9 = inlined_call_operand.vmem [shape: f32[32,1], index: 9, kind: input, shape index: {}]
  %s10 = inlined_call_operand.vmem [shape: bf16[8,64], index: 10, kind: input, shape index: {}]
  %s11 = inlined_call_operand.vmem [shape: f32[1,64], index: 11, kind: input, shape index: {}]
  %s12 = inlined_call_operand.vmem [shape: bf16[64,64], index: 12, kind: input, shape index: {}]
  %s13 = inlined_call_operand.vmem [shape: f32[1,64], index: 13, kind: input, shape index: {}]
  %s14 = inlined_call_operand.vmem [shape: bf16[64,128], index: 14, kind: input, shape index: {}]
  %s15 = inlined_call_operand.vmem [shape: f32[1,128], index: 15, kind: input, shape index: {}]
  %s16 = inlined_call_operand.vmem [shape: f32[2,2,128], index: 16, kind: output, shape index: {}]
  %s17 = sld [smem:[#allocation0]]
  $region97: #{cnn_gnn_forward.1} parent=0
    _
  %s19 = ssub.s32 1, %s17
  %s20 = scalar_select 0, %s19, %s17
  loop: start=0, step=1, limit=4
  $region2: #{cnn_gnn_forward.1} parent=0 // loop_pre_header
    _
  $region3: #{cnn_gnn_forward.1} parent=0 // loop_header
    %s22 = sphi 0, %s26
    %p23 = scmp.ge.s32.totalorder %s22, 4
    %s32 = sphi 0, %s34
    %s35 = sphi 0, %s32
    %s36 = sphi 0, %s35
    %s52 = sphi 0, %s36
    %s56 = sphi 0, %s56
    %s58 = sphi 0, %s56
    %s59 = sphi 0, %s58
    %s73 = sphi 0, %s59
    %s77 = sphi 0, %s77
    %s79 = sphi 0, %s77
    %s80 = sphi 0, %s79
    %s94 = sphi 0, %s80
    %s98 = sphi 0, %s98
    %s100 = sphi 0, %s98
    %s101 = sphi 0, %s100
    %s115 = sphi 0, %s101
    %s119 = sphi 0, %s119
    %s121 = sphi 0, %s119
    %s122 = sphi 0, %s121
    %s136 = sphi 0, %s122
    %s140 = sphi 0, %s140
    %s142 = sphi 0, %s140
    %s143 = sphi 0, %s142
    %s157 = sphi 0, %s143
    %s161 = sphi 0, %s161
    %s163 = sphi 0, %s161
    %s164 = sphi 0, %s163
    %s178 = sphi 0, %s164
    %s182 = sphi 0, %s182
    %s184 = sphi 0, %s182
    %s185 = sphi 0, %s184
    %s199 = sphi 0, %s185
    %s203 = sphi 0, %s203
    %s205 = sphi 0, %s203
    %s206 = sphi 0, %s205
    %s220 = sphi 0, %s206
    %s224 = sphi 0, %s224
    %s226 = sphi 0, %s224
    %s227 = sphi 0, %s226
    %s241 = sphi 0, %s227
    %s245 = sphi 0, %s245
    %s247 = sphi 0, %s245
    %s248 = sphi 0, %s247
    %s262 = sphi 0, %s248
    %s266 = sphi 0, %s266
    %s268 = sphi 0, %s266
    %s269 = sphi 0, %s268
    %s283 = sphi 0, %s269
    %s287 = sphi 0, %s287
    %s289 = sphi 0, %s287
    %s290 = sphi 0, %s289
    %s304 = sphi 0, %s290
    %s308 = sphi 0, %s308
    %s310 = sphi 0, %s308
    %s311 = sphi 0, %s310
    %s325 = sphi 0, %s311
    %s329 = sphi 0, %s329
    %s331 = sphi 0, %s329
    %s332 = sphi 0, %s331
    %s346 = sphi 0, %s332
    %s350 = sphi 0, %s350
    %s352 = sphi 0, %s350
    %s353 = sphi 0, %s352
    %s367 = sphi 0, %s353
    %s373 = sphi 0, %s375
    %s376 = sphi 0, %s373
    %s377 = sphi 0, %s376
    %s393 = sphi 0, %s377
  $region4: #{cnn_gnn_forward.1} parent=0 // loop_header_branch
    %25 = sbr.rel (%p23) target = $region8
  $region5: #{cnn_gnn_forward.1} parent=0 // loop_body
    %s27 = ssub.s32 %s22, 1
    %s28 = ssub.s32 %s22, 2
    %s29 = sadd.s32 %s22, 1
    %s30 = ssub.s32 %s22, %s29
    %p31 = scmp.eq.s32.totalorder %s30, 0
    %s33 = sadd.s32 %s32, 1
    %s34 = scalar_select %p31, %s32, %s33
    %p37 = pneg %p31
    %p38 = scmp.eq.s32.totalorder %s22, 1
    %p39 = por %p37, %p38
    %p40 = scmp.ne.s32.totalorder %s32, %s35
    %p41 = scmp.eq.s32.totalorder %s22, 0
    %p42 = por %p40, %p41
    %p43 = scmp.ne.s32.totalorder %s32, %s35
    %p44 = scmp.eq.s32.totalorder %s27, 1
    %p45 = por %p43, %p44
    %p46 = scmp.ne.s32.totalorder %s35, %s36
    %p47 = scmp.eq.s32.totalorder %s27, 0
    %p48 = por %p46, %p47
    %p49 = scmp.ne.s32.totalorder %s35, %s36
    %p50 = scmp.eq.s32.totalorder %s28, 1
    %p51 = por %p49, %p50
    %p53 = scmp.ne.s32.totalorder %s36, %s52
    %p54 = scmp.eq.s32.totalorder %s28, 0
    %p55 = por %p53, %p54
    %s57 = sadd.s32 %s56, 1
    %p60 = scmp.eq.s32.totalorder %s22, 1
    %p61 = scmp.ne.s32.totalorder %s56, %s58
    %p62 = scmp.eq.s32.totalorder %s22, 0
    %p63 = por %p61, %p62
    %p64 = scmp.ne.s32.totalorder %s56, %s58
    %p65 = scmp.eq.s32.totalorder %s27, 1
    %p66 = por %p64, %p65
    %p67 = scmp.ne.s32.totalorder %s58, %s59
    %p68 = scmp.eq.s32.totalorder %s27, 0
    %p69 = por %p67, %p68
    %p70 = scmp.ne.s32.totalorder %s58, %s59
    %p71 = scmp.eq.s32.totalorder %s28, 1
    %p72 = por %p70, %p71
    %p74 = scmp.ne.s32.totalorder %s59, %s73
    %p75 = scmp.eq.s32.totalorder %s28, 0
    %p76 = por %p74, %p75
    %s78 = sadd.s32 %s77, 1
    %p81 = scmp.eq.s32.totalorder %s22, 1
    %p82 = scmp.ne.s32.totalorder %s77, %s79
    %p83 = scmp.eq.s32.totalorder %s22, 0
    %p84 = por %p82, %p83
    %p85 = scmp.ne.s32.totalorder %s77, %s79
    %p86 = scmp.eq.s32.totalorder %s27, 1
    %p87 = por %p85, %p86
    %p88 = scmp.ne.s32.totalorder %s79, %s80
    %p89 = scmp.eq.s32.totalorder %s27, 0
    %p90 = por %p88, %p89
    %p91 = scmp.ne.s32.totalorder %s79, %s80
    %p92 = scmp.eq.s32.totalorder %s28, 1
    %p93 = por %p91, %p92
    %p95 = scmp.ne.s32.totalorder %s80, %s94
    %p96 = scmp.eq.s32.totalorder %s28, 0
    %p97 = por %p95, %p96
    %s99 = sadd.s32 %s98, 1
    %p102 = scmp.eq.s32.totalorder %s22, 1
    %p103 = scmp.ne.s32.totalorder %s98, %s100
    %p104 = scmp.eq.s32.totalorder %s22, 0
    %p105 = por %p103, %p104
    %p106 = scmp.ne.s32.totalorder %s98, %s100
    %p107 = scmp.eq.s32.totalorder %s27, 1
    %p108 = por %p106, %p107
    %p109 = scmp.ne.s32.totalorder %s100, %s101
    %p110 = scmp.eq.s32.totalorder %s27, 0
    %p111 = por %p109, %p110
    %p112 = scmp.ne.s32.totalorder %s100, %s101
    %p113 = scmp.eq.s32.totalorder %s28, 1
    %p114 = por %p112, %p113
    %p116 = scmp.ne.s32.totalorder %s101, %s115
    %p117 = scmp.eq.s32.totalorder %s28, 0
    %p118 = por %p116, %p117
    %s120 = sadd.s32 %s119, 1
    %p123 = scmp.eq.s32.totalorder %s22, 1
    %p124 = scmp.ne.s32.totalorder %s119, %s121
    %p125 = scmp.eq.s32.totalorder %s22, 0
    %p126 = por %p124, %p125
    %p127 = scmp.ne.s32.totalorder %s119, %s121
    %p128 = scmp.eq.s32.totalorder %s27, 1
    %p129 = por %p127, %p128
    %p130 = scmp.ne.s32.totalorder %s121, %s122
    %p131 = scmp.eq.s32.totalorder %s27, 0
    %p132 = por %p130, %p131
    %p133 = scmp.ne.s32.totalorder %s121, %s122
    %p134 = scmp.eq.s32.totalorder %s28, 1
    %p135 = por %p133, %p134
    %p137 = scmp.ne.s32.totalorder %s122, %s136
    %p138 = scmp.eq.s32.totalorder %s28, 0
    %p139 = por %p137, %p138
    %s141 = sadd.s32 %s140, 1
    %p144 = scmp.eq.s32.totalorder %s22, 1
    %p145 = scmp.ne.s32.totalorder %s140, %s142
    %p146 = scmp.eq.s32.totalorder %s22, 0
    %p147 = por %p145, %p146
    %p148 = scmp.ne.s32.totalorder %s140, %s142
    %p149 = scmp.eq.s32.totalorder %s27, 1
    %p150 = por %p148, %p149
    %p151 = scmp.ne.s32.totalorder %s142, %s143
    %p152 = scmp.eq.s32.totalorder %s27, 0
    %p153 = por %p151, %p152
    %p154 = scmp.ne.s32.totalorder %s142, %s143
    %p155 = scmp.eq.s32.totalorder %s28, 1
    %p156 = por %p154, %p155
    %p158 = scmp.ne.s32.totalorder %s143, %s157
    %p159 = scmp.eq.s32.totalorder %s28, 0
    %p160 = por %p158, %p159
    %s162 = sadd.s32 %s161, 1
    %p165 = scmp.eq.s32.totalorder %s22, 1
    %p166 = scmp.ne.s32.totalorder %s161, %s163
    %p167 = scmp.eq.s32.totalorder %s22, 0
    %p168 = por %p166, %p167
    %p169 = scmp.ne.s32.totalorder %s161, %s163
    %p170 = scmp.eq.s32.totalorder %s27, 1
    %p171 = por %p169, %p170
    %p172 = scmp.ne.s32.totalorder %s163, %s164
    %p173 = scmp.eq.s32.totalorder %s27, 0
    %p174 = por %p172, %p173
    %p175 = scmp.ne.s32.totalorder %s163, %s164
    %p176 = scmp.eq.s32.totalorder %s28, 1
    %p177 = por %p175, %p176
    %p179 = scmp.ne.s32.totalorder %s164, %s178
    %p180 = scmp.eq.s32.totalorder %s28, 0
    %p181 = por %p179, %p180
    %s183 = sadd.s32 %s182, 1
    %p186 = scmp.eq.s32.totalorder %s22, 1
    %p187 = scmp.ne.s32.totalorder %s182, %s184
    %p188 = scmp.eq.s32.totalorder %s22, 0
    %p189 = por %p187, %p188
    %p190 = scmp.ne.s32.totalorder %s182, %s184
    %p191 = scmp.eq.s32.totalorder %s27, 1
    %p192 = por %p190, %p191
    %p193 = scmp.ne.s32.totalorder %s184, %s185
    %p194 = scmp.eq.s32.totalorder %s27, 0
    %p195 = por %p193, %p194
    %p196 = scmp.ne.s32.totalorder %s184, %s185
    %p197 = scmp.eq.s32.totalorder %s28, 1
    %p198 = por %p196, %p197
    %p200 = scmp.ne.s32.totalorder %s185, %s199
    %p201 = scmp.eq.s32.totalorder %s28, 0
    %p202 = por %p200, %p201
    %s204 = sadd.s32 %s203, 1
    %p207 = scmp.eq.s32.totalorder %s22, 1
    %p208 = scmp.ne.s32.totalorder %s203, %s205
    %p209 = scmp.eq.s32.totalorder %s22, 0
    %p210 = por %p208, %p209
    %p211 = scmp.ne.s32.totalorder %s203, %s205
    %p212 = scmp.eq.s32.totalorder %s27, 1
    %p213 = por %p211, %p212
    %p214 = scmp.ne.s32.totalorder %s205, %s206
    %p215 = scmp.eq.s32.totalorder %s27, 0
    %p216 = por %p214, %p215
    %p217 = scmp.ne.s32.totalorder %s205, %s206
    %p218 = scmp.eq.s32.totalorder %s28, 1
    %p219 = por %p217, %p218
    %p221 = scmp.ne.s32.totalorder %s206, %s220
    %p222 = scmp.eq.s32.totalorder %s28, 0
    %p223 = por %p221, %p222
    %s225 = sadd.s32 %s224, 1
    %p228 = scmp.eq.s32.totalorder %s22, 1
    %p229 = scmp.ne.s32.totalorder %s224, %s226
    %p230 = scmp.eq.s32.totalorder %s22, 0
    %p231 = por %p229, %p230
    %p232 = scmp.ne.s32.totalorder %s224, %s226
    %p233 = scmp.eq.s32.totalorder %s27, 1
    %p234 = por %p232, %p233
    %p235 = scmp.ne.s32.totalorder %s226, %s227
    %p236 = scmp.eq.s32.totalorder %s27, 0
    %p237 = por %p235, %p236
    %p238 = scmp.ne.s32.totalorder %s226, %s227
    %p239 = scmp.eq.s32.totalorder %s28, 1
    %p240 = por %p238, %p239
    %p242 = scmp.ne.s32.totalorder %s227, %s241
    %p243 = scmp.eq.s32.totalorder %s28, 0
    %p244 = por %p242, %p243
    %s246 = sadd.s32 %s245, 1
    %p249 = scmp.eq.s32.totalorder %s22, 1
    %p250 = scmp.ne.s32.totalorder %s245, %s247
    %p251 = scmp.eq.s32.totalorder %s22, 0
    %p252 = por %p250, %p251
    %p253 = scmp.ne.s32.totalorder %s245, %s247
    %p254 = scmp.eq.s32.totalorder %s27, 1
    %p255 = por %p253, %p254
    %p256 = scmp.ne.s32.totalorder %s247, %s248
    %p257 = scmp.eq.s32.totalorder %s27, 0
    %p258 = por %p256, %p257
    %p259 = scmp.ne.s32.totalorder %s247, %s248
    %p260 = scmp.eq.s32.totalorder %s28, 1
    %p261 = por %p259, %p260
    %p263 = scmp.ne.s32.totalorder %s248, %s262
    %p264 = scmp.eq.s32.totalorder %s28, 0
    %p265 = por %p263, %p264
    %s267 = sadd.s32 %s266, 1
    %p270 = scmp.eq.s32.totalorder %s22, 1
    %p271 = scmp.ne.s32.totalorder %s266, %s268
    %p272 = scmp.eq.s32.totalorder %s22, 0
    %p273 = por %p271, %p272
    %p274 = scmp.ne.s32.totalorder %s266, %s268
    %p275 = scmp.eq.s32.totalorder %s27, 1
    %p276 = por %p274, %p275
    %p277 = scmp.ne.s32.totalorder %s268, %s269
    %p278 = scmp.eq.s32.totalorder %s27, 0
    %p279 = por %p277, %p278
    %p280 = scmp.ne.s32.totalorder %s268, %s269
    %p281 = scmp.eq.s32.totalorder %s28, 1
    %p282 = por %p280, %p281
    %p284 = scmp.ne.s32.totalorder %s269, %s283
    %p285 = scmp.eq.s32.totalorder %s28, 0
    %p286 = por %p284, %p285
    %s288 = sadd.s32 %s287, 1
    %p291 = scmp.eq.s32.totalorder %s22, 1
    %p292 = scmp.ne.s32.totalorder %s287, %s289
    %p293 = scmp.eq.s32.totalorder %s22, 0
    %p294 = por %p292, %p293
    %p295 = scmp.ne.s32.totalorder %s287, %s289
    %p296 = scmp.eq.s32.totalorder %s27, 1
    %p297 = por %p295, %p296
    %p298 = scmp.ne.s32.totalorder %s289, %s290
    %p299 = scmp.eq.s32.totalorder %s27, 0
    %p300 = por %p298, %p299
    %p301 = scmp.ne.s32.totalorder %s289, %s290
    %p302 = scmp.eq.s32.totalorder %s28, 1
    %p303 = por %p301, %p302
    %p305 = scmp.ne.s32.totalorder %s290, %s304
    %p306 = scmp.eq.s32.totalorder %s28, 0
    %p307 = por %p305, %p306
    %s309 = sadd.s32 %s308, 1
    %p312 = scmp.eq.s32.totalorder %s22, 1
    %p313 = scmp.ne.s32.totalorder %s308, %s310
    %p314 = scmp.eq.s32.totalorder %s22, 0
    %p315 = por %p313, %p314
    %p316 = scmp.ne.s32.totalorder %s308, %s310
    %p317 = scmp.eq.s32.totalorder %s27, 1
    %p318 = por %p316, %p317
    %p319 = scmp.ne.s32.totalorder %s310, %s311
    %p320 = scmp.eq.s32.totalorder %s27, 0
    %p321 = por %p319, %p320
    %p322 = scmp.ne.s32.totalorder %s310, %s311
    %p323 = scmp.eq.s32.totalorder %s28, 1
    %p324 = por %p322, %p323
    %p326 = scmp.ne.s32.totalorder %s311, %s325
    %p327 = scmp.eq.s32.totalorder %s28, 0
    %p328 = por %p326, %p327
    %s330 = sadd.s32 %s329, 1
    %p333 = scmp.eq.s32.totalorder %s22, 1
    %p334 = scmp.ne.s32.totalorder %s329, %s331
    %p335 = scmp.eq.s32.totalorder %s22, 0
    %p336 = por %p334, %p335
    %p337 = scmp.ne.s32.totalorder %s329, %s331
    %p338 = scmp.eq.s32.totalorder %s27, 1
    %p339 = por %p337, %p338
    %p340 = scmp.ne.s32.totalorder %s331, %s332
    %p341 = scmp.eq.s32.totalorder %s27, 0
    %p342 = por %p340, %p341
    %p343 = scmp.ne.s32.totalorder %s331, %s332
    %p344 = scmp.eq.s32.totalorder %s28, 1
    %p345 = por %p343, %p344
    %p347 = scmp.ne.s32.totalorder %s332, %s346
    %p348 = scmp.eq.s32.totalorder %s28, 0
    %p349 = por %p347, %p348
    %s351 = sadd.s32 %s350, 1
    %p354 = scmp.eq.s32.totalorder %s22, 1
    %p355 = scmp.ne.s32.totalorder %s350, %s352
    %p356 = scmp.eq.s32.totalorder %s22, 0
    %p357 = por %p355, %p356
    %p358 = scmp.ne.s32.totalorder %s350, %s352
    %p359 = scmp.eq.s32.totalorder %s27, 1
    %p360 = por %p358, %p359
    %p361 = scmp.ne.s32.totalorder %s352, %s353
    %p362 = scmp.eq.s32.totalorder %s27, 0
    %p363 = por %p361, %p362
    %p364 = scmp.ne.s32.totalorder %s352, %s353
    %p365 = scmp.eq.s32.totalorder %s28, 1
    %p366 = por %p364, %p365
    %p368 = scmp.ne.s32.totalorder %s353, %s367
    %p369 = scmp.eq.s32.totalorder %s28, 0
    %p370 = por %p368, %p369
    %s371 = ssub.s32 %s22, %s29
    %p372 = scmp.eq.s32.totalorder %s371, 0
    %s374 = sadd.s32 %s373, 1
    %s375 = scalar_select %p372, %s373, %s374
    %p378 = pneg %p372
    %p379 = scmp.eq.s32.totalorder %s22, 1
    %p380 = por %p378, %p379
    %p381 = scmp.ne.s32.totalorder %s373, %s376
    %p382 = scmp.eq.s32.totalorder %s22, 0
    %p383 = por %p381, %p382
    %p384 = scmp.ne.s32.totalorder %s373, %s376
    %p385 = scmp.eq.s32.totalorder %s27, 1
    %p386 = por %p384, %p385
    %p387 = scmp.ne.s32.totalorder %s376, %s377
    %p388 = scmp.eq.s32.totalorder %s27, 0
    %p389 = por %p387, %p388
    %p390 = scmp.ne.s32.totalorder %s376, %s377
    %p391 = scmp.eq.s32.totalorder %s28, 1
    %p392 = por %p390, %p391
    %p394 = scmp.ne.s32.totalorder %s377, %s393
    %p395 = scmp.eq.s32.totalorder %s28, 0
    %p396 = por %p394, %p395
    %p397 = scmp.le.s32.totalorder 1, %s22
    %p398 = scmp.lt.s32.totalorder %s22, 3
    %p399 = pnand %p397, %p398
    %p400 = pneg %p399
    // Predicated region
    $region9: #{cnn_gnn_forward.1} parent=5 // pred_check
      _
    $region10: #{cnn_gnn_forward.1} parent=5 // pred_check_branch
      %402 = sbr.rel (%p399) target = $region12
    $region11: #{cnn_gnn_forward.1} parent=5 // pred_region
      %s403 = ssub.s32 %s22, 1
      // Predicated region
      $region13: #{cnn_gnn_forward.1} parent=11 // pred_check
        %p404 = pneg %p69
      $region14: #{cnn_gnn_forward.1} parent=11 // pred_check_branch
        %406 = sbr.rel (%p404) target = $region16
      $region15: #{cnn_gnn_forward.1} parent=11 // pred_region
        _
      $region16: #{cnn_gnn_forward.1} parent=11 // pred_fallthru
        _
      // Predicated region
      $region17: #{cnn_gnn_forward.1} parent=11 // pred_check
        %p407 = pneg %p90
      $region18: #{cnn_gnn_forward.1} parent=11 // pred_check_branch
        %409 = sbr.rel (%p407) target = $region20
      $region19: #{cnn_gnn_forward.1} parent=11 // pred_region
        _
      $region20: #{cnn_gnn_forward.1} parent=11 // pred_fallthru
        _
      // Predicated region
      $region21: #{cnn_gnn_forward.1} parent=11 // pred_check
        %p410 = pneg %p111
      $region22: #{cnn_gnn_forward.1} parent=11 // pred_check_branch
        %412 = sbr.rel (%p410) target = $region24
      $region23: #{cnn_gnn_forward.1} parent=11 // pred_region
        _
      $region24: #{cnn_gnn_forward.1} parent=11 // pred_fallthru
        _
      // Predicated region
      $region25: #{cnn_gnn_forward.1} parent=11 // pred_check
        %p413 = pneg %p132
      $region26: #{cnn_gnn_forward.1} parent=11 // pred_check_branch
        %415 = sbr.rel (%p413) target = $region28
      $region27: #{cnn_gnn_forward.1} parent=11 // pred_region
        _
      $region28: #{cnn_gnn_forward.1} parent=11 // pred_fallthru
        _
      // Predicated region
      $region29: #{cnn_gnn_forward.1} parent=11 // pred_check
        %p416 = pneg %p153
      $region30: #{cnn_gnn_forward.1} parent=11 // pred_check_branch
        %418 = sbr.rel (%p416) target = $region32
      $region31: #{cnn_gnn_forward.1} parent=11 // pred_region
        _
      $region32: #{cnn_gnn_forward.1} parent=11 // pred_fallthru
        _
      // Predicated region
      $region33: #{cnn_gnn_forward.1} parent=11 // pred_check
        %p419 = pneg %p174
      $region34: #{cnn_gnn_forward.1} parent=11 // pred_check_branch
        %421 = sbr.rel (%p419) target = $region36
      $region35: #{cnn_gnn_forward.1} parent=11 // pred_region
        _
      $region36: #{cnn_gnn_forward.1} parent=11 // pred_fallthru
        _
      // Predicated region
      $region37: #{cnn_gnn_forward.1} parent=11 // pred_check
        %p422 = pneg %p195
      $region38: #{cnn_gnn_forward.1} parent=11 // pred_check_branch
        %424 = sbr.rel (%p422) target = $region40
      $region39: #{cnn_gnn_forward.1} parent=11 // pred_region
        _
      $region40: #{cnn_gnn_forward.1} parent=11 // pred_fallthru
        _
      // Predicated region
      $region41: #{cnn_gnn_forward.1} parent=11 // pred_check
        %p425 = pneg %p216
      $region42: #{cnn_gnn_forward.1} parent=11 // pred_check_branch
        %427 = sbr.rel (%p425) target = $region44
      $region43: #{cnn_gnn_forward.1} parent=11 // pred_region
        _
      $region44: #{cnn_gnn_forward.1} parent=11 // pred_fallthru
        _
      // Predicated region
      $region45: #{cnn_gnn_forward.1} parent=11 // pred_check
        %p428 = pneg %p237
      $region46: #{cnn_gnn_forward.1} parent=11 // pred_check_branch
        %430 = sbr.rel (%p428) target = $region48
      $region47: #{cnn_gnn_forward.1} parent=11 // pred_region
        _
      $region48: #{cnn_gnn_forward.1} parent=11 // pred_fallthru
        _
      // Predicated region
      $region49: #{cnn_gnn_forward.1} parent=11 // pred_check
        %p431 = pneg %p258
      $region50: #{cnn_gnn_forward.1} parent=11 // pred_check_branch
        %433 = sbr.rel (%p431) target = $region52
      $region51: #{cnn_gnn_forward.1} parent=11 // pred_region
        _
      $region52: #{cnn_gnn_forward.1} parent=11 // pred_fallthru
        _
      // Predicated region
      $region53: #{cnn_gnn_forward.1} parent=11 // pred_check
        %p434 = pneg %p279
      $region54: #{cnn_gnn_forward.1} parent=11 // pred_check_branch
        %436 = sbr.rel (%p434) target = $region56
      $region55: #{cnn_gnn_forward.1} parent=11 // pred_region
        _
      $region56: #{cnn_gnn_forward.1} parent=11 // pred_fallthru
        _
      // Predicated region
      $region57: #{cnn_gnn_forward.1} parent=11 // pred_check
        %p437 = pneg %p300
      $region58: #{cnn_gnn_forward.1} parent=11 // pred_check_branch
        %439 = sbr.rel (%p437) target = $region60
      $region59: #{cnn_gnn_forward.1} parent=11 // pred_region
        _
      $region60: #{cnn_gnn_forward.1} parent=11 // pred_fallthru
        _
      // Predicated region
      $region61: #{cnn_gnn_forward.1} parent=11 // pred_check
        %p440 = pneg %p321
      $region62: #{cnn_gnn_forward.1} parent=11 // pred_check_branch
        %442 = sbr.rel (%p440) target = $region64
      $region63: #{cnn_gnn_forward.1} parent=11 // pred_region
        _
      $region64: #{cnn_gnn_forward.1} parent=11 // pred_fallthru
        _
      // Predicated region
      $region65: #{cnn_gnn_forward.1} parent=11 // pred_check
        %p443 = pneg %p342
      $region66: #{cnn_gnn_forward.1} parent=11 // pred_check_branch
        %445 = sbr.rel (%p443) target = $region68
      $region67: #{cnn_gnn_forward.1} parent=11 // pred_region
        _
      $region68: #{cnn_gnn_forward.1} parent=11 // pred_fallthru
        _
      // Predicated region
      $region69: #{cnn_gnn_forward.1} parent=11 // pred_check
        %p446 = pneg %p363
      $region70: #{cnn_gnn_forward.1} parent=11 // pred_check_branch
        %448 = sbr.rel (%p446) target = $region72
      $region71: #{cnn_gnn_forward.1} parent=11 // pred_region
        _
      $region72: #{cnn_gnn_forward.1} parent=11 // pred_fallthru
        _
    $region12: #{cnn_gnn_forward.1} parent=5 // pred_fallthru
      _
    %p449 = scmp.lt.s32.totalorder %s22, 2
    // Predicated region
    $region73: #{cnn_gnn_forward.1} parent=5 // pred_check
      %p450 = pneg %p449
    $region74: #{cnn_gnn_forward.1} parent=5 // pred_check_branch
      %452 = sbr.rel (%p450) target = $region76
    $region75: #{cnn_gnn_forward.1} parent=5 // pred_region
      // Predicated region
      $region77: #{cnn_gnn_forward.1} parent=75 // pred_check
        %p453 = pneg %p42
      $region78: #{cnn_gnn_forward.1} parent=75 // pred_check_branch
        %455 = sbr.rel (%p453) target = $region80
      $region79: #{cnn_gnn_forward.1} parent=75 // pred_region
        %p456 = scmp.lt.s32.totalorder %s22, 1
        %s457 = scalar_select %p456, %s22, 1
        %s458 = smul.addr %s457, 4
        %s459 = smul.addr %s458, 8
        %s460 = scalar_lea.vmem %s0, %s459
      $region80: #{cnn_gnn_forward.1} parent=75 // pred_fallthru
        _
    $region76: #{cnn_gnn_forward.1} parent=5 // pred_fallthru
      _
    %p461 = scmp.le.s32.totalorder 1, %s22
    %p462 = scmp.lt.s32.totalorder %s22, 3
    %p463 = pnand %p461, %p462
    %p464 = pneg %p463
    // Predicated region
    $region81: #{cnn_gnn_forward.1} parent=5 // pred_check
      _
    $region82: #{cnn_gnn_forward.1} parent=5 // pred_check_branch
      %466 = sbr.rel (%p463) target = $region84
    $region83: #{cnn_gnn_forward.1} parent=5 // pred_region
      %s467 = ssub.s32 %s22, 1
      %p468 = scmp.lt.s32.totalorder %s27, 1
      %s469 = scalar_select %p468, %s27, 1
      %s470 = smul.addr %s469, 4
      %s471 = smul.addr %s470, 8
      %s472 = scalar_lea.vmem %s0, %s471
      %p473 = pneg %p48
      %p474 = pneg %p45
      %p475 = pneg %p69
      %p476 = pneg %p66
      %p477 = pneg %p90
      %p478 = pneg %p87
      %p479 = pneg %p111
      %p480 = pneg %p108
      %p481 = pneg %p132
      %p482 = pneg %p129
      %p483 = pneg %p153
      %p484 = pneg %p150
      %p485 = pneg %p174
      %p486 = pneg %p171
      %p487 = pneg %p195
      %p488 = pneg %p192
      %p489 = pneg %p216
      %p490 = pneg %p213
      %p491 = pneg %p237
      %p492 = pneg %p234
      %p493 = pneg %p258
      %p494 = pneg %p255
      %p495 = pneg %p279
      %p496 = pneg %p276
      %p497 = pneg %p300
      %p498 = pneg %p297
      %p499 = pneg %p321
      %p500 = pneg %p318
      %p501 = pneg %p342
      %p502 = pneg %p339
      %p503 = pneg %p363
      %p504 = pneg %p360
      %p505 = pneg %p389
      %p506 = pneg %p386
      %p507 = scmp.lt.s32.totalorder %s27, 1
      %s508 = scalar_select %p507, %s27, 1
      %s509 = smul.addr %s508, 2
      %s510 = scalar_lea.vmem %s16, %s509
      %p511 = scmp.lt.s32.totalorder %s27, 1
      %s512 = scalar_select %p511, %s27, 1
      %s513 = smul.addr %s512, 4
      %s514 = smul.addr %s513, 8
      %s515 = scalar_lea.vmem %s0, %s514
      %p516 = scmp.lt.s32.totalorder %s27, 1
      %s517 = scalar_select %p516, %s27, 1
      %s518 = smul.addr %s517, 2
      %s519 = scalar_lea.vmem %s16, %s518
      %v521 = vld [vmem:[%s515] sm:$0xff]
      %v522 = vld [vmem:[%s515 + $0x8] sm:$0xff]
      %v523 = vld [vmem:[%s515 + $0x10] sm:$0xff]
      %v524 = vld [vmem:[%s515 + $0x18] sm:$0xff]
      %v525 = vld [vmem:[%s5] sm:$0xff]
      %v526 = vld [vmem:[%s5 + $0x8] sm:$0xff]
      %v527 = vld [vmem:[%s5 + $0x10] sm:$0xff]
      %v528 = vld [vmem:[%s5 + $0x18] sm:$0xff]
      %v529 = vld [vmem:[%s6] sm:$0xff]
      %v530 = vld [vmem:[%s6 + $0x8] sm:$0xff]
      %v531 = vld [vmem:[%s6 + $0x10] sm:$0xff]
      %v532 = vld [vmem:[%s6 + $0x18] sm:$0xff]
      %537 = vrot.lane.b32.xlu0 %v521, 125
      %v538 = vpop.permute.xlu0 %537
      %539 = vrot.lane.b32.xlu0 %v522, 125
      %v540 = vpop.permute.xlu0 %539
      %541 = vrot.lane.b32.xlu0 %v523, 125
      %v542 = vpop.permute.xlu0 %541
      %543 = vrot.lane.b32.xlu0 %v524, 125
      %v544 = vpop.permute.xlu0 %543
      %v549 = vrot.slane %v538, 7
      %v550 = vrot.slane %v540, 7
      %v551 = vrot.slane %v542, 7
      %v552 = vrot.slane %v544, 7
      %v553 = vlaneseq
      %v554 = vshrl.u32 %v553, 7
      %vm555 = vcmp.lt.s32.totalorder %v554, 1
      %v556 = vsel %vm555, %v551, %v552
      %v557 = vsel %vm555, %v550, %v551
      %v558 = vsel %vm555, %v549, %v550
      %v559 = vsel %vm555, %v552, %v549
      %v560 = vmul.f32 %v559, %v525
      %v561 = vmul.f32 %v558, %v526
      %v562 = vmul.f32 %v557, %v527
      %v563 = vmul.f32 %v556, %v528
      %v564 = vld [vmem:[%s1] sm:$0x1]
      %566 = vset.pattern.permute.xlu0 0
      %567 = vperm.xlu0 %566, %v560
      %v568 = vpop.permute.xlu0 %567
      %571 = vset.pattern.permute.xlu0 0
      %572 = vperm.xlu0 %571, %v561
      %v573 = vpop.permute.xlu0 %572
      %576 = vset.pattern.permute.xlu0 0
      %577 = vperm.xlu0 %576, %v562
      %v578 = vpop.permute.xlu0 %577
      %581 = vset.pattern.permute.xlu0 0
      %582 = vperm.xlu0 %581, %v563
      %v583 = vpop.permute.xlu0 %582
      %v585 = vlaneseq
      %v586 = vshrl.u32 %v585, 7
      %v587 = vsub.s32 0, %v586
      %v588 = vrot.slane %v564, %v587
      %v589 = vmul.f32 %v568, %v588
      %v590 = vmul.f32 %v573, %v588
      %v591 = vmul.f32 %v578, %v588
      %v592 = vmul.f32 %v583, %v588
      %v593 = vld [vmem:[%s1 + $0x1] sm:$0x1]
      %594 = vset.pattern.permute.xlu0 0
      %595 = vperm.xlu0 %594, %v521
      %v596 = vpop.permute.xlu0 %595
      %598 = vset.pattern.permute.xlu0 0
      %599 = vperm.xlu0 %598, %v522
      %v600 = vpop.permute.xlu0 %599
      %602 = vset.pattern.permute.xlu0 0
      %603 = vperm.xlu0 %602, %v523
      %v604 = vpop.permute.xlu0 %603
      %606 = vset.pattern.permute.xlu0 0
      %607 = vperm.xlu0 %606, %v524
      %v608 = vpop.permute.xlu0 %607
      %v610 = vlaneseq
      %v611 = vshrl.u32 %v610, 7
      %v612 = vsub.s32 0, %v611
      %v613 = vrot.slane %v593, %v612
      %v614 = vmul.f32 %v596, %v613
      %v615 = vmul.f32 %v600, %v613
      %v616 = vmul.f32 %v604, %v613
      %v617 = vmul.f32 %v608, %v613
      %v618 = vadd.f32 %v589, %v614
      %v619 = vadd.f32 %v590, %v615
      %v620 = vadd.f32 %v591, %v616
      %v621 = vadd.f32 %v592, %v617
      %v622 = vld [vmem:[%s1 + $0x2] sm:$0x1]
      %623 = vset.pattern.permute.xlu0 1
      %624 = vperm.xlu0 %623, %v521
      %v625 = vpop.permute.xlu0 %624
      %627 = vset.pattern.permute.xlu0 1
      %628 = vperm.xlu0 %627, %v522
      %v629 = vpop.permute.xlu0 %628
      %631 = vset.pattern.permute.xlu0 1
      %632 = vperm.xlu0 %631, %v523
      %v633 = vpop.permute.xlu0 %632
      %635 = vset.pattern.permute.xlu0 1
      %636 = vperm.xlu0 %635, %v524
      %v637 = vpop.permute.xlu0 %636
      %v639 = vlaneseq
      %v640 = vshrl.u32 %v639, 7
      %v641 = vsub.s32 0, %v640
      %v642 = vrot.slane %v622, %v641
      %v643 = vmul.f32 %v625, %v642
      %v644 = vmul.f32 %v629, %v642
      %v645 = vmul.f32 %v633, %v642
      %v646 = vmul.f32 %v637, %v642
      %v647 = vadd.f32 %v618, %v643
      %v648 = vadd.f32 %v619, %v644
      %v649 = vadd.f32 %v620, %v645
      %v650 = vadd.f32 %v621, %v646
      %v651 = vld [vmem:[%s2] sm:$0x1]
      %v653 = vlaneseq
      %v654 = vshrl.u32 %v653, 7
      %v655 = vsub.s32 0, %v654
      %v656 = vrot.slane %v651, %v655
      %v658 = vadd.f32 %v647, %v656
      %v659 = vadd.f32 %v648, %v656
      %v660 = vadd.f32 %v649, %v656
      %v661 = vadd.f32 %v650, %v656
      %v662 = vmax.f32 %v658, 0.0
      %v663 = vmax.f32 %v659, 0.0
      %v664 = vmax.f32 %v660, 0.0
      %v665 = vmax.f32 %v661, 0.0
      %v666 = vmul.f32 %v596, %v588
      %v667 = vmul.f32 %v600, %v588
      %v668 = vmul.f32 %v604, %v588
      %v669 = vmul.f32 %v608, %v588
      %v670 = vmul.f32 %v625, %v613
      %v671 = vmul.f32 %v629, %v613
      %v672 = vmul.f32 %v633, %v613
      %v673 = vmul.f32 %v637, %v613
      %v674 = vadd.f32 %v666, %v670
      %v675 = vadd.f32 %v667, %v671
      %v676 = vadd.f32 %v668, %v672
      %v677 = vadd.f32 %v669, %v673
      %678 = vset.pattern.permute.xlu0 2
      %679 = vperm.xlu0 %678, %v521
      %v680 = vpop.permute.xlu0 %679
      %682 = vset.pattern.permute.xlu0 2
      %683 = vperm.xlu0 %682, %v522
      %v684 = vpop.permute.xlu0 %683
      %686 = vset.pattern.permute.xlu0 2
      %687 = vperm.xlu0 %686, %v523
      %v688 = vpop.permute.xlu0 %687
      %690 = vset.pattern.permute.xlu0 2
      %691 = vperm.xlu0 %690, %v524
      %v692 = vpop.permute.xlu0 %691
      %v694 = vmul.f32 %v680, %v642
      %v695 = vmul.f32 %v684, %v642
      %v696 = vmul.f32 %v688, %v642
      %v697 = vmul.f32 %v692, %v642
      %v698 = vadd.f32 %v674, %v694
      %v699 = vadd.f32 %v675, %v695
      %v700 = vadd.f32 %v676, %v696
      %v701 = vadd.f32 %v677, %v697
      %v702 = vadd.f32 %v698, %v656
      %v703 = vadd.f32 %v699, %v656
      %v704 = vadd.f32 %v700, %v656
      %v705 = vadd.f32 %v701, %v656
      %v706 = vmax.f32 %v702, 0.0
      %v707 = vmax.f32 %v703, 0.0
      %v708 = vmax.f32 %v704, 0.0
      %v709 = vmax.f32 %v705, 0.0
      %v710 = vmul.f32 %v625, %v588
      %v711 = vmul.f32 %v629, %v588
      %v712 = vmul.f32 %v633, %v588
      %v713 = vmul.f32 %v637, %v588
      %v714 = vmul.f32 %v680, %v613
      %v715 = vmul.f32 %v684, %v613
      %v716 = vmul.f32 %v688, %v613
      %v717 = vmul.f32 %v692, %v613
      %v718 = vadd.f32 %v710, %v714
      %v719 = vadd.f32 %v711, %v715
      %v720 = vadd.f32 %v712, %v716
      %v721 = vadd.f32 %v713, %v717
      %722 = vset.pattern.permute.xlu0 3
      %723 = vperm.xlu0 %722, %v521
      %v724 = vpop.permute.xlu0 %723
      %726 = vset.pattern.permute.xlu0 3
      %727 = vperm.xlu0 %726, %v522
      %v728 = vpop.permute.xlu0 %727
      %730 = vset.pattern.permute.xlu0 3
      %731 = vperm.xlu0 %730, %v523
      %v732 = vpop.permute.xlu0 %731
      %734 = vset.pattern.permute.xlu0 3
      %735 = vperm.xlu0 %734, %v524
      %v736 = vpop.permute.xlu0 %735
      %v738 = vmul.f32 %v724, %v642
      %v739 = vmul.f32 %v728, %v642
      %v740 = vmul.f32 %v732, %v642
      %v741 = vmul.f32 %v736, %v642
      %v742 = vadd.f32 %v718, %v738
      %v743 = vadd.f32 %v719, %v739
      %v744 = vadd.f32 %v720, %v740
      %v745 = vadd.f32 %v721, %v741
      %v746 = vadd.f32 %v742, %v656
      %v747 = vadd.f32 %v743, %v656
      %v748 = vadd.f32 %v744, %v656
      %v749 = vadd.f32 %v745, %v656
      %v750 = vmax.f32 %v746, 0.0
      %v751 = vmax.f32 %v747, 0.0
      %v752 = vmax.f32 %v748, 0.0
      %v753 = vmax.f32 %v749, 0.0
      %v754 = vrot.slane %v521, 1
      %v755 = vrot.slane %v522, 1
      %v756 = vrot.slane %v523, 1
      %v757 = vrot.slane %v524, 1
      %vm758 = vcmp.lt.s32.totalorder %v554, 7
      %v759 = vsel %vm758, %v756, %v757
      %v760 = vsel %vm758, %v755, %v756
      %v761 = vsel %vm758, %v754, %v755
      %v762 = vsel %vm758, %v757, %v754
      %v763 = vmul.f32 %v761, %v529
      %v764 = vmul.f32 %v760, %v530
      %v765 = vmul.f32 %v759, %v531
      %v766 = vmul.f32 %v762, %v532
      %v767 = vmul.f32 %v680, %v588
      %v768 = vmul.f32 %v684, %v588
      %v769 = vmul.f32 %v688, %v588
      %v770 = vmul.f32 %v692, %v588
      %v771 = vmul.f32 %v724, %v613
      %v772 = vmul.f32 %v728, %v613
      %v773 = vmul.f32 %v732, %v613
      %v774 = vmul.f32 %v736, %v613
      %v775 = vadd.f32 %v767, %v771
      %v776 = vadd.f32 %v768, %v772
      %v777 = vadd.f32 %v769, %v773
      %v778 = vadd.f32 %v770, %v774
      %780 = vset.pattern.permute.xlu0 0
      %781 = vperm.xlu0 %780, %v763
      %v782 = vpop.permute.xlu0 %781
      %785 = vset.pattern.permute.xlu0 0
      %786 = vperm.xlu0 %785, %v764
      %v787 = vpop.permute.xlu0 %786
      %790 = vset.pattern.permute.xlu0 0
      %791 = vperm.xlu0 %790, %v765
      %v792 = vpop.permute.xlu0 %791
      %795 = vset.pattern.permute.xlu0 0
      %796 = vperm.xlu0 %795, %v766
      %v797 = vpop.permute.xlu0 %796
      %v799 = vmul.f32 %v782, %v642
      %v800 = vmul.f32 %v787, %v642
      %v801 = vmul.f32 %v792, %v642
      %v802 = vmul.f32 %v797, %v642
      %v803 = vadd.f32 %v775, %v799
      %v804 = vadd.f32 %v776, %v800
      %v805 = vadd.f32 %v777, %v801
      %v806 = vadd.f32 %v778, %v802
      %v807 = vadd.f32 %v803, %v656
      %v808 = vadd.f32 %v804, %v656
      %v809 = vadd.f32 %v805, %v656
      %v810 = vadd.f32 %v806, %v656
      %v811 = vmax.f32 %v807, 0.0
      %v812 = vmax.f32 %v808, 0.0
      %v813 = vmax.f32 %v809, 0.0
      %v814 = vmax.f32 %v810, 0.0
      %v815 = vmax.f32 %v662, %v706
      %v816 = vmax.f32 %v663, %v707
      %v817 = vmax.f32 %v664, %v708
      %v818 = vmax.f32 %v665, %v709
      %v819 = vmax.f32 %v750, %v811
      %v820 = vmax.f32 %v751, %v812
      %v821 = vmax.f32 %v752, %v813
      %v822 = vmax.f32 %v753, %v814
      %v823 = vrot.slane %v819, 7
      %v824 = vrot.slane %v820, 7
      %v825 = vrot.slane %v821, 7
      %v826 = vrot.slane %v822, 7
      %v827 = vsel %vm555, %v825, %v826
      %v828 = vsel %vm555, %v824, %v825
      %v829 = vsel %vm555, %v823, %v824
      %v830 = vsel %vm555, %v826, %v823
      %832 = vset.pattern.permute.xlu0 0
      %833 = vperm.xlu0 %832, %v525
      %v834 = vpop.permute.xlu0 %833
      %837 = vset.pattern.permute.xlu0 0
      %838 = vperm.xlu0 %837, %v526
      %v839 = vpop.permute.xlu0 %838
      %842 = vset.pattern.permute.xlu0 0
      %843 = vperm.xlu0 %842, %v527
      %v844 = vpop.permute.xlu0 %843
      %847 = vset.pattern.permute.xlu0 0
      %848 = vperm.xlu0 %847, %v528
      %v849 = vpop.permute.xlu0 %848
      %v851 = vmul.f32 %v830, %v834
      %v852 = vmul.f32 %v829, %v839
      %v853 = vmul.f32 %v828, %v844
      %v854 = vmul.f32 %v827, %v849
      %859 = vrot.lane.b32.xlu0 %v815, 8
      %v860 = vpop.permute.xlu0 %859
      %861 = vrot.lane.b32.xlu0 %v816, 8
      %v862 = vpop.permute.xlu0 %861
      %863 = vrot.lane.b32.xlu0 %v817, 8
      %v864 = vpop.permute.xlu0 %863
      %865 = vrot.lane.b32.xlu0 %v818, 8
      %v866 = vpop.permute.xlu0 %865
      %875 = vrot.lane.b32.xlu0 %v819, 16
      %v876 = vpop.permute.xlu0 %875
      %877 = vrot.lane.b32.xlu0 %v820, 16
      %v878 = vpop.permute.xlu0 %877
      %879 = vrot.lane.b32.xlu0 %v821, 16
      %v880 = vpop.permute.xlu0 %879
      %881 = vrot.lane.b32.xlu0 %v822, 16
      %v882 = vpop.permute.xlu0 %881
      %vm887 = vcmask 64512
      %v888 = vsel %vm887, %v851, %v860
      %v889 = vsel %vm887, %v852, %v862
      %v890 = vsel %vm887, %v853, %v864
      %v891 = vsel %vm887, %v854, %v866
      %vm892 = vcmask 130048
      %v893 = vsel %vm892, %v888, %v876
      %v894 = vsel %vm892, %v889, %v878
      %v895 = vsel %vm892, %v890, %v880
      %v896 = vsel %vm892, %v891, %v882
      %v897 = vld [vmem:[%s3] sm:$0xff]
      %v898 = vld [vmem:[%s3 + $0x8] sm:$0xff]
      %v899 = vld [vmem:[%s3 + $0x10] sm:$0xff]
      %v900 = vld [vmem:[%s4] sm:$0x1]
      %v902 = vlaneseq
      %v903 = vshrl.u32 %v902, 7
      %v904 = vsub.s32 0, %v903
      %v905 = vrot.slane %v900, %v904
      %vm907 = vcmask 195584
      %v909 = vsel %vm907, %v893, 0
      %v912 = vsel %vm907, %v894, 0
      %v915 = vsel %vm907, %v895, 0
      %v918 = vsel %vm907, %v896, 0
      %920 = vmatprep.subr.mxu0 0.0
      %921 = vmatpush1.msra.mxu0 %v897
      %922 = vmatprep.subr.mxu0 0.0
      %923 = vmatpush1.msra.mxu0 %v898
      %924 = vmatprep.subr.mxu0 0.0
      %925 = vmatpush1.msra.mxu0 %v899
      %926 = vmatprep.subr.mxu0 0.0
      %927 = vmatpush1.msra.mxu0 0.0
      %928 = vmatprep.subr.mxu0 0.0
      %929 = vmatpush1.msra.mxu0 0.0
      %930 = vmatprep.subr.mxu0 0.0
      %931 = vmatpush1.msra.mxu0 0.0
      %932 = vmatprep.subr.mxu0 0.0
      %933 = vmatpush1.msra.mxu0 0.0
      %934 = vmatprep.subr.mxu0 0.0
      %935 = vmatpush1.msra.mxu0 0.0
      %936 = vmatprep.subr.mxu0 0.0
      %937 = vmatpush1.msra.mxu0 0.0
      %938 = vmatprep.subr.mxu0 0.0
      %939 = vmatpush1.msra.mxu0 0.0
      %940 = vmatprep.subr.mxu0 0.0
      %941 = vmatpush1.msra.mxu0 0.0
      %942 = vmatprep.subr.mxu0 0.0
      %943 = vmatpush1.msra.mxu0 0.0
      %944 = vmatprep.subr.mxu0 0.0
      %945 = vmatpush1.msra.mxu0 0.0
      %946 = vmatprep.subr.mxu0 0.0
      %947 = vmatpush1.msra.mxu0 0.0
      %948 = vmatprep.subr.mxu0 0.0
      %949 = vmatpush1.msra.mxu0 0.0
      %950 = vmatprep.subr.mxu0 0.0
      %951 = vmatpush1.msra.mxu0 0.0
      %952 = vmatprep.subr.mxu0 0.0
      %953 = vmatpush1.msra.mxu0 0.0
      %954 = vmatprep.subr.mxu0 0.0
      %955 = vmatpush1.msra.mxu0 0.0
      %956 = vmatprep.subr.mxu0 0.0
      %957 = vmatpush1.msra.mxu0 0.0
      %958 = vmatprep.subr.mxu0 0.0
      %959 = vmatpush1.msra.mxu0 0.0
      %960 = vmatprep.subr.mxu0 0.0
      %961 = vmatpush1.msra.mxu0 0.0
      %962 = vmatprep.subr.mxu0 0.0
      %963 = vmatpush1.msra.mxu0 0.0
      %964 = vmatprep.subr.mxu0 0.0
      %965 = vmatpush1.msra.mxu0 0.0
      %966 = vmatprep.subr.mxu0 0.0
      %967 = vmatpush1.msra.mxu0 0.0
      %968 = vmatprep.subr.mxu0 0.0
      %969 = vmatpush1.msra.mxu0 0.0
      %970 = vmatprep.subr.mxu0 0.0
      %971 = vmatpush1.msra.mxu0 0.0
      %972 = vmatprep.subr.mxu0 0.0
      %973 = vmatpush1.msra.mxu0 0.0
      %974 = vmatprep.subr.mxu0 0.0
      %975 = vmatpush1.msra.mxu0 0.0
      %976 = vmatprep.subr.mxu0 0.0
      %977 = vmatpush1.msra.mxu0 0.0
      %978 = vmatprep.subr.mxu0 0.0
      %979 = vmatpush1.msra.mxu0 0.0
      %980 = vmatprep.subr.mxu0 0.0
      %981 = vmatpush1.msra.mxu0 0.0
      %982 = vmatprep.subr.mxu0 0.0
      %983 = vmatpush1.msra.mxu0 0.0
      %984 = vmatprep.mubr.f32.mxu0 0.0
      %985 = vmatmul.mubr.f32.gmra.mrb[0].mxu0 %v909
      %v986 = vpop.f32.mrb[0].mxu0
      %v987 = vadd.f32 %v905, %v986
      %v988 = vpop.f32.mrb[0].mxu0
      %989 = vmatprep.mubr.f32.mxu0 0.0
      %990 = vmatmul.mubr.f32.gmra.mrb[0].mxu0 %v912
      %v991 = vpop.f32.mrb[0].mxu0
      %v992 = vadd.f32 %v905, %v991
      %v993 = vpop.f32.mrb[0].mxu0
      %994 = vmatprep.mubr.f32.mxu0 0.0
      %995 = vmatmul.mubr.f32.gmra.mrb[0].mxu0 %v915
      %v996 = vpop.f32.mrb[0].mxu0
      %v997 = vadd.f32 %v905, %v996
      %v998 = vpop.f32.mrb[0].mxu0
      %999 = vmatprep.mubr.f32.mxu0 0.0
      %1000 = vmatmul.mubr.f32.gmra.mrb[0].mxu0 %v918
      %v1001 = vpop.f32.mrb[0].mxu0
      %v1002 = vadd.f32 %v905, %v1001
      %v1003 = vpop.f32.mrb[0].mxu0
      %1004 = vdwg.mxu0
      %v1005 = vmax.f32 %v987, 0.0
      %v1006 = vmax.f32 %v992, 0.0
      %v1007 = vmax.f32 %v997, 0.0
      %v1008 = vmax.f32 %v1002, 0.0
      %v1009 = vrot.slane %v815, 1
      %v1010 = vrot.slane %v816, 1
      %v1011 = vrot.slane %v817, 1
      %v1012 = vrot.slane %v818, 1
      %v1013 = vsel %vm758, %v1011, %v1012
      %v1014 = vsel %vm758, %v1010, %v1011
      %v1015 = vsel %vm758, %v1009, %v1010
      %v1016 = vsel %vm758, %v1012, %v1009
      %1018 = vset.pattern.permute.xlu0 0
      %1019 = vperm.xlu0 %1018, %v529
      %v1020 = vpop.permute.xlu0 %1019
      %1023 = vset.pattern.permute.xlu0 0
      %1024 = vperm.xlu0 %1023, %v530
      %v1025 = vpop.permute.xlu0 %1024
      %1028 = vset.pattern.permute.xlu0 0
      %1029 = vperm.xlu0 %1028, %v531
      %v1030 = vpop.permute.xlu0 %1029
      %1033 = vset.pattern.permute.xlu0 0
      %1034 = vperm.xlu0 %1033, %v532
      %v1035 = vpop.permute.xlu0 %1034
      %v1037 = vmul.f32 %v1015, %v1020
      %v1038 = vmul.f32 %v1014, %v1025
      %v1039 = vmul.f32 %v1013, %v1030
      %v1040 = vmul.f32 %v1016, %v1035
      %1041 = vrot.lane.b32.xlu0 %v819, 8
      %v1042 = vpop.permute.xlu0 %1041
      %1043 = vrot.lane.b32.xlu0 %v820, 8
      %v1044 = vpop.permute.xlu0 %1043
      %1045 = vrot.lane.b32.xlu0 %v821, 8
      %v1046 = vpop.permute.xlu0 %1045
      %1047 = vrot.lane.b32.xlu0 %v822, 8
      %v1048 = vpop.permute.xlu0 %1047
      %1057 = vrot.lane.b32.xlu0 %v1037, 16
      %v1058 = vpop.permute.xlu0 %1057
      %1059 = vrot.lane.b32.xlu0 %v1038, 16
      %v1060 = vpop.permute.xlu0 %1059
      %1061 = vrot.lane.b32.xlu0 %v1039, 16
      %v1062 = vpop.permute.xlu0 %1061
      %1063 = vrot.lane.b32.xlu0 %v1040, 16
      %v1064 = vpop.permute.xlu0 %1063
      %v1069 = vsel %vm887, %v815, %v1042
      %v1070 = vsel %vm887, %v816, %v1044
      %v1071 = vsel %vm887, %v817, %v1046
      %v1072 = vsel %vm887, %v818, %v1048
      %v1073 = vsel %vm892, %v1069, %v1058
      %v1074 = vsel %vm892, %v1070, %v1060
      %v1075 = vsel %vm892, %v1071, %v1062
      %v1076 = vsel %vm892, %v1072, %v1064
      %v1078 = vsel %vm907, %v1073, 0
      %v1081 = vsel %vm907, %v1074, 0
      %v1084 = vsel %vm907, %v1075, 0
      %v1087 = vsel %vm907, %v1076, 0
      %1089 = vmatprep.subr.mxu0 0.0
      %1090 = vmatpush1.msra.mxu0 %v897
      %1091 = vmatprep.subr.mxu0 0.0
      %1092 = vmatpush1.msra.mxu0 %v898
      %1093 = vmatprep.subr.mxu0 0.0
      %1094 = vmatpush1.msra.mxu0 %v899
      %1095 = vmatprep.subr.mxu0 0.0
      %1096 = vmatpush1.msra.mxu0 0.0
      %1097 = vmatprep.subr.mxu0 0.0
      %1098 = vmatpush1.msra.mxu0 0.0
      %1099 = vmatprep.subr.mxu0 0.0
      %1100 = vmatpush1.msra.mxu0 0.0
      %1101 = vmatprep.subr.mxu0 0.0
      %1102 = vmatpush1.msra.mxu0 0.0
      %1103 = vmatprep.subr.mxu0 0.0
      %1104 = vmatpush1.msra.mxu0 0.0
      %1105 = vmatprep.subr.mxu0 0.0
      %1106 = vmatpush1.msra.mxu0 0.0
      %1107 = vmatprep.subr.mxu0 0.0
      %1108 = vmatpush1.msra.mxu0 0.0
      %1109 = vmatprep.subr.mxu0 0.0
      %1110 = vmatpush1.msra.mxu0 0.0
      %1111 = vmatprep.subr.mxu0 0.0
      %1112 = vmatpush1.msra.mxu0 0.0
      %1113 = vmatprep.subr.mxu0 0.0
      %1114 = vmatpush1.msra.mxu0 0.0
      %1115 = vmatprep.subr.mxu0 0.0
      %1116 = vmatpush1.msra.mxu0 0.0
      %1117 = vmatprep.subr.mxu0 0.0
      %1118 = vmatpush1.msra.mxu0 0.0
      %1119 = vmatprep.subr.mxu0 0.0
      %1120 = vmatpush1.msra.mxu0 0.0
      %1121 = vmatprep.subr.mxu0 0.0
      %1122 = vmatpush1.msra.mxu0 0.0
      %1123 = vmatprep.subr.mxu0 0.0
      %1124 = vmatpush1.msra.mxu0 0.0
      %1125 = vmatprep.subr.mxu0 0.0
      %1126 = vmatpush1.msra.mxu0 0.0
      %1127 = vmatprep.subr.mxu0 0.0
      %1128 = vmatpush1.msra.mxu0 0.0
      %1129 = vmatprep.subr.mxu0 0.0
      %1130 = vmatpush1.msra.mxu0 0.0
      %1131 = vmatprep.subr.mxu0 0.0
      %1132 = vmatpush1.msra.mxu0 0.0
      %1133 = vmatprep.subr.mxu0 0.0
      %1134 = vmatpush1.msra.mxu0 0.0
      %1135 = vmatprep.subr.mxu0 0.0
      %1136 = vmatpush1.msra.mxu0 0.0
      %1137 = vmatprep.subr.mxu0 0.0
      %1138 = vmatpush1.msra.mxu0 0.0
      %1139 = vmatprep.subr.mxu0 0.0
      %1140 = vmatpush1.msra.mxu0 0.0
      %1141 = vmatprep.subr.mxu0 0.0
      %1142 = vmatpush1.msra.mxu0 0.0
      %1143 = vmatprep.subr.mxu0 0.0
      %1144 = vmatpush1.msra.mxu0 0.0
      %1145 = vmatprep.subr.mxu0 0.0
      %1146 = vmatpush1.msra.mxu0 0.0
      %1147 = vmatprep.subr.mxu0 0.0
      %1148 = vmatpush1.msra.mxu0 0.0
      %1149 = vmatprep.subr.mxu0 0.0
      %1150 = vmatpush1.msra.mxu0 0.0
      %1151 = vmatprep.subr.mxu0 0.0
      %1152 = vmatpush1.msra.mxu0 0.0
      %1153 = vmatprep.mubr.f32.mxu0 0.0
      %1154 = vmatmul.mubr.f32.gmra.mrb[0].mxu0 %v1078
      %v1155 = vpop.f32.mrb[0].mxu0
      %v1156 = vadd.f32 %v905, %v1155
      %v1157 = vpop.f32.mrb[0].mxu0
      %1158 = vmatprep.mubr.f32.mxu0 0.0
      %1159 = vmatmul.mubr.f32.gmra.mrb[0].mxu0 %v1081
      %v1160 = vpop.f32.mrb[0].mxu0
      %v1161 = vadd.f32 %v905, %v1160
      %v1162 = vpop.f32.mrb[0].mxu0
      %1163 = vmatprep.mubr.f32.mxu0 0.0
      %1164 = vmatmul.mubr.f32.gmra.mrb[0].mxu0 %v1084
      %v1165 = vpop.f32.mrb[0].mxu0
      %v1166 = vadd.f32 %v905, %v1165
      %v1167 = vpop.f32.mrb[0].mxu0
      %1168 = vmatprep.mubr.f32.mxu0 0.0
      %1169 = vmatmul.mubr.f32.gmra.mrb[0].mxu0 %v1087
      %v1170 = vpop.f32.mrb[0].mxu0
      %v1171 = vadd.f32 %v905, %v1170
      %v1172 = vpop.f32.mrb[0].mxu0
      %1173 = vdwg.mxu0
      %v1174 = vmax.f32 %v1156, 0.0
      %v1175 = vmax.f32 %v1161, 0.0
      %v1176 = vmax.f32 %v1166, 0.0
      %v1177 = vmax.f32 %v1171, 0.0
      %v1178 = vmax.f32 %v1005, %v1174
      %v1179 = vmax.f32 %v1006, %v1175
      %v1180 = vmax.f32 %v1007, %v1176
      %v1181 = vmax.f32 %v1008, %v1177
      %v1182 = vld [vmem:[%s7] sm:$0xff]
      %v1183 = vld [vmem:[%s7 + $0x8] sm:$0xff]
      %v1184 = vld [vmem:[%s7 + $0x10] sm:$0xff]
      %v1185 = vld [vmem:[%s7 + $0x18] sm:$0xff]
      %v1186 = vld [vmem:[%s8] sm:$0xff]
      %v1187 = vld [vmem:[%s8 + $0x8] sm:$0xff]
      %v1188 = vld [vmem:[%s8 + $0x10] sm:$0xff]
      %v1189 = vld [vmem:[%s8 + $0x18] sm:$0xff]
      %v1190 = vld [vmem:[%s9] sm:$0xff]
      %v1191 = vld [vmem:[%s9 + $0x8] sm:$0xff]
      %v1192 = vld [vmem:[%s9 + $0x10] sm:$0xff]
      %v1193 = vld [vmem:[%s9 + $0x18] sm:$0xff]
      %v1194 = vpack.c.bf16 %v1179, %v1178
      %v1195 = vpack.c.bf16 %v1181, %v1180
      %v1196 = vld [vmem:[%s10] sm:$0xf]
      %v1198 = vsel %vm887, %v1194, 0
      %v1201 = vsel %vm887, %v1195, 0
      %vm1203 = vcmask 1043456
      %v1205 = vsel %vm1203, %v1196, 0
      %1207 = vmatprep.subr.bf16.mxu0 0
      %1208 = vmatpush1.bf16.msra.mxu0 %v1205
      %1209 = vmatprep.subr.bf16.mxu0 0
      %1210 = vmatpush1.bf16.msra.mxu0 0
      %1211 = vmatprep.subr.bf16.mxu0 0
      %1212 = vmatpush1.bf16.msra.mxu0 0
      %1213 = vmatprep.subr.bf16.mxu0 0
      %1214 = vmatpush1.bf16.msra.mxu0 0
      %1215 = vmatprep.subr.bf16.mxu0 0
      %1216 = vmatpush1.bf16.msra.mxu0 0
      %1217 = vmatprep.subr.bf16.mxu0 0
      %1218 = vmatpush1.bf16.msra.mxu0 0
      %1219 = vmatprep.subr.bf16.mxu0 0
      %1220 = vmatpush1.bf16.msra.mxu0 0
      %1221 = vmatprep.subr.bf16.mxu0 0
      %1222 = vmatpush1.bf16.msra.mxu0 0
      %1223 = vmatprep.subr.bf16.mxu0 0
      %1224 = vmatpush1.bf16.msra.mxu0 0
      %1225 = vmatprep.subr.bf16.mxu0 0
      %1226 = vmatpush1.bf16.msra.mxu0 0
      %1227 = vmatprep.subr.bf16.mxu0 0
      %1228 = vmatpush1.bf16.msra.mxu0 0
      %1229 = vmatprep.subr.bf16.mxu0 0
      %1230 = vmatpush1.bf16.msra.mxu0 0
      %1231 = vmatprep.subr.bf16.mxu0 0
      %1232 = vmatpush1.bf16.msra.mxu0 0
      %1233 = vmatprep.subr.bf16.mxu0 0
      %1234 = vmatpush1.bf16.msra.mxu0 0
      %1235 = vmatprep.subr.bf16.mxu0 0
      %1236 = vmatpush1.bf16.msra.mxu0 0
      %1237 = vmatprep.subr.bf16.mxu0 0
      %1238 = vmatpush1.bf16.msra.mxu0 0
      %1239 = vmatprep.mubr.bf16.mxu0 0
      %1240 = vmatmul.mubr.bf16.gmra.mrb[0].mxu0 %v1198
      %v1241 = vpop.f32.mrb[0].mxu0
      %v1242 = vadd.f32 0.0, %v1241
      %v1243 = vpop.f32.mrb[0].mxu0
      %v1244 = vpop.f32.mrb[0].mxu0
      %v1245 = vadd.f32 0.0, %v1244
      %v1246 = vpop.f32.mrb[0].mxu0
      %1247 = vmatprep.mubr.bf16.mxu0 0
      %1248 = vmatmul.mubr.bf16.gmra.mrb[0].mxu0 %v1201
      %v1249 = vpop.f32.mrb[0].mxu0
      %v1250 = vadd.f32 0.0, %v1249
      %v1251 = vpop.f32.mrb[0].mxu0
      %v1252 = vpop.f32.mrb[0].mxu0
      %v1253 = vadd.f32 0.0, %v1252
      %v1254 = vpop.f32.mrb[0].mxu0
      %1255 = vdwg.mxu0
      %1257 = vset.pattern.permute.xlu0 0
      %1258 = vperm.xlu0 %1257, %v1182
      %v1259 = vpop.permute.xlu0 %1258
      %1262 = vset.pattern.permute.xlu0 0
      %1263 = vperm.xlu0 %1262, %v1183
      %v1264 = vpop.permute.xlu0 %1263
      %1267 = vset.pattern.permute.xlu0 0
      %1268 = vperm.xlu0 %1267, %v1184
      %v1269 = vpop.permute.xlu0 %1268
      %1272 = vset.pattern.permute.xlu0 0
      %1273 = vperm.xlu0 %1272, %v1185
      %v1274 = vpop.permute.xlu0 %1273
      %v1276 = vmul.f32 %v1259, %v1242
      %v1277 = vmul.f32 %v1264, %v1245
      %v1278 = vmul.f32 %v1269, %v1250
      %v1279 = vmul.f32 %v1274, %v1253
      %v1280 = vrot.slane %v1242, 7
      %v1281 = vrot.slane %v1245, 7
      %v1282 = vrot.slane %v1250, 7
      %v1283 = vrot.slane %v1253, 7
      %v1284 = vsel %vm555, %v1282, %v1283
      %v1285 = vsel %vm555, %v1281, %v1282
      %v1286 = vsel %vm555, %v1280, %v1281
      %v1287 = vsel %vm555, %v1283, %v1280
      %1289 = vset.pattern.permute.xlu0 0
      %1290 = vperm.xlu0 %1289, %v1186
      %v1291 = vpop.permute.xlu0 %1290
      %1294 = vset.pattern.permute.xlu0 0
      %1295 = vperm.xlu0 %1294, %v1187
      %v1296 = vpop.permute.xlu0 %1295
      %1299 = vset.pattern.permute.xlu0 0
      %1300 = vperm.xlu0 %1299, %v1188
      %v1301 = vpop.permute.xlu0 %1300
      %1304 = vset.pattern.permute.xlu0 0
      %1305 = vperm.xlu0 %1304, %v1189
      %v1306 = vpop.permute.xlu0 %1305
      %v1308 = vmul.f32 %v1291, %v1287
      %v1309 = vmul.f32 %v1296, %v1286
      %v1310 = vmul.f32 %v1301, %v1285
      %v1311 = vmul.f32 %v1306, %v1284
      %v1312 = vadd.f32 %v1276, %v1308
      %v1313 = vadd.f32 %v1277, %v1309
      %v1314 = vadd.f32 %v1278, %v1310
      %v1315 = vadd.f32 %v1279, %v1311
      %v1316 = vrot.slane %v1242, 1
      %v1317 = vrot.slane %v1245, 1
      %v1318 = vrot.slane %v1250, 1
      %v1319 = vrot.slane %v1253, 1
      %v1320 = vsel %vm758, %v1318, %v1319
      %v1321 = vsel %vm758, %v1317, %v1318
      %v1322 = vsel %vm758, %v1316, %v1317
      %v1323 = vsel %vm758, %v1319, %v1316
      %1325 = vset.pattern.permute.xlu0 0
      %1326 = vperm.xlu0 %1325, %v1190
      %v1327 = vpop.permute.xlu0 %1326
      %1330 = vset.pattern.permute.xlu0 0
      %1331 = vperm.xlu0 %1330, %v1191
      %v1332 = vpop.permute.xlu0 %1331
      %1335 = vset.pattern.permute.xlu0 0
      %1336 = vperm.xlu0 %1335, %v1192
      %v1337 = vpop.permute.xlu0 %1336
      %1340 = vset.pattern.permute.xlu0 0
      %1341 = vperm.xlu0 %1340, %v1193
      %v1342 = vpop.permute.xlu0 %1341
      %v1344 = vmul.f32 %v1327, %v1322
      %v1345 = vmul.f32 %v1332, %v1321
      %v1346 = vmul.f32 %v1337, %v1320
      %v1347 = vmul.f32 %v1342, %v1323
      %v1348 = vadd.f32 %v1312, %v1344
      %v1349 = vadd.f32 %v1313, %v1345
      %v1350 = vadd.f32 %v1314, %v1346
      %v1351 = vadd.f32 %v1315, %v1347
      %v1352 = vld [vmem:[%s11] sm:$0x1]
      %v1354 = vlaneseq
      %v1355 = vshrl.u32 %v1354, 7
      %v1356 = vsub.s32 0, %v1355
      %v1357 = vrot.slane %v1352, %v1356
      %v1359 = vadd.f32 %v1348, %v1357
      %v1360 = vadd.f32 %v1349, %v1357
      %v1361 = vadd.f32 %v1350, %v1357
      %v1362 = vadd.f32 %v1351, %v1357
      %v1363 = vmax.f32 %v1359, 0.0
      %v1364 = vmax.f32 %v1360, 0.0
      %v1365 = vmax.f32 %v1361, 0.0
      %v1366 = vmax.f32 %v1362, 0.0
      %v1367 = vpack.c.bf16 %v1364, %v1363
      %v1368 = vpack.c.bf16 %v1366, %v1365
      %v1369 = vld [vmem:[%s12] sm:$0xf]
      %v1370 = vld [vmem:[%s12 + $0x4] sm:$0xf]
      %v1371 = vld [vmem:[%s12 + $0x8] sm:$0xf]
      %v1372 = vld [vmem:[%s12 + $0xc] sm:$0xf]
      %v1373 = vld [vmem:[%s12 + $0x10] sm:$0xf]
      %v1374 = vld [vmem:[%s12 + $0x14] sm:$0xf]
      %v1375 = vld [vmem:[%s12 + $0x18] sm:$0xf]
      %v1376 = vld [vmem:[%s12 + $0x1c] sm:$0xf]
      %v1385 = vunpack.c.l.b16 %v1369
      %v1386 = vunpack.c.l.b16 %v1370
      %v1387 = vunpack.c.l.b16 %v1371
      %v1388 = vunpack.c.l.b16 %v1372
      %v1389 = vunpack.c.l.b16 %v1373
      %v1390 = vunpack.c.l.b16 %v1374
      %v1391 = vunpack.c.l.b16 %v1375
      %v1392 = vunpack.c.l.b16 %v1376
      %v1393 = vpack.c.b16 %v1386, %v1385
      %v1394 = vpack.c.b16 %v1388, %v1387
      %v1395 = vpack.c.b16 %v1390, %v1389
      %v1396 = vpack.c.b16 %v1392, %v1391
      %vm1401 = vcmask 523264
      %v1403 = vsel %vm1401, %v1367, 0
      %v1406 = vsel %vm1401, %v1368, 0
      %1408 = vmatprep.subr.bf16.mxu0 0
      %1409 = vmatpush1.bf16.msra.mxu0 %v1393
      %1410 = vmatprep.subr.bf16.mxu0 0
      %1411 = vmatpush1.bf16.msra.mxu0 %v1394
      %1412 = vmatprep.subr.bf16.mxu0 0
      %1413 = vmatpush1.bf16.msra.mxu0 %v1395
      %1414 = vmatprep.subr.bf16.mxu0 0
      %1415 = vmatpush1.bf16.msra.mxu0 %v1396
      %1416 = vmatprep.subr.bf16.mxu0 0
      %1417 = vmatpush1.bf16.msra.mxu0 0
      %1418 = vmatprep.subr.bf16.mxu0 0
      %1419 = vmatpush1.bf16.msra.mxu0 0
      %1420 = vmatprep.subr.bf16.mxu0 0
      %1421 = vmatpush1.bf16.msra.mxu0 0
      %1422 = vmatprep.subr.bf16.mxu0 0
      %1423 = vmatpush1.bf16.msra.mxu0 0
      %1424 = vmatprep.subr.bf16.mxu0 0
      %1425 = vmatpush1.bf16.msra.mxu0 0
      %1426 = vmatprep.subr.bf16.mxu0 0
      %1427 = vmatpush1.bf16.msra.mxu0 0
      %1428 = vmatprep.subr.bf16.mxu0 0
      %1429 = vmatpush1.bf16.msra.mxu0 0
      %1430 = vmatprep.subr.bf16.mxu0 0
      %1431 = vmatpush1.bf16.msra.mxu0 0
      %1432 = vmatprep.subr.bf16.mxu0 0
      %1433 = vmatpush1.bf16.msra.mxu0 0
      %1434 = vmatprep.subr.bf16.mxu0 0
      %1435 = vmatpush1.bf16.msra.mxu0 0
      %1436 = vmatprep.subr.bf16.mxu0 0
      %1437 = vmatpush1.bf16.msra.mxu0 0
      %1438 = vmatprep.subr.bf16.mxu0 0
      %1439 = vmatpush1.bf16.msra.mxu0 0
      %1440 = vmatprep.mubr.bf16.mxu0 0
      %1441 = vmatmul.mubr.bf16.gmra.mrb[0].mxu0 %v1403
      %v1442 = vpop.f32.mrb[0].mxu0
      %v1443 = vadd.f32 0.0, %v1442
      %v1444 = vpop.f32.mrb[0].mxu0
      %v1445 = vpop.f32.mrb[0].mxu0
      %v1446 = vadd.f32 0.0, %v1445
      %v1447 = vpop.f32.mrb[0].mxu0
      %1448 = vmatprep.mubr.bf16.mxu0 0
      %1449 = vmatmul.mubr.bf16.gmra.mrb[0].mxu0 %v1406
      %v1450 = vpop.f32.mrb[0].mxu0
      %v1451 = vadd.f32 0.0, %v1450
      %v1452 = vpop.f32.mrb[0].mxu0
      %v1453 = vpop.f32.mrb[0].mxu0
      %v1454 = vadd.f32 0.0, %v1453
      %v1455 = vpop.f32.mrb[0].mxu0
      %1456 = vdwg.mxu0
      %v1457 = vmul.f32 %v1259, %v1443
      %v1458 = vmul.f32 %v1264, %v1446
      %v1459 = vmul.f32 %v1269, %v1451
      %v1460 = vmul.f32 %v1274, %v1454
      %v1461 = vrot.slane %v1443, 7
      %v1462 = vrot.slane %v1446, 7
      %v1463 = vrot.slane %v1451, 7
      %v1464 = vrot.slane %v1454, 7
      %v1465 = vsel %vm555, %v1463, %v1464
      %v1466 = vsel %vm555, %v1462, %v1463
      %v1467 = vsel %vm555, %v1461, %v1462
      %v1468 = vsel %vm555, %v1464, %v1461
      %v1469 = vmul.f32 %v1291, %v1468
      %v1470 = vmul.f32 %v1296, %v1467
      %v1471 = vmul.f32 %v1301, %v1466
      %v1472 = vmul.f32 %v1306, %v1465
      %v1473 = vadd.f32 %v1457, %v1469
      %v1474 = vadd.f32 %v1458, %v1470
      %v1475 = vadd.f32 %v1459, %v1471
      %v1476 = vadd.f32 %v1460, %v1472
      %v1477 = vrot.slane %v1443, 1
      %v1478 = vrot.slane %v1446, 1
      %v1479 = vrot.slane %v1451, 1
      %v1480 = vrot.slane %v1454, 1
      %v1481 = vsel %vm758, %v1479, %v1480
      %v1482 = vsel %vm758, %v1478, %v1479
      %v1483 = vsel %vm758, %v1477, %v1478
      %v1484 = vsel %vm758, %v1480, %v1477
      %v1485 = vmul.f32 %v1327, %v1483
      %v1486 = vmul.f32 %v1332, %v1482
      %v1487 = vmul.f32 %v1337, %v1481
      %v1488 = vmul.f32 %v1342, %v1484
      %v1489 = vadd.f32 %v1473, %v1485
      %v1490 = vadd.f32 %v1474, %v1486
      %v1491 = vadd.f32 %v1475, %v1487
      %v1492 = vadd.f32 %v1476, %v1488
      %v1493 = vld [vmem:[%s13] sm:$0x1]
      %v1495 = vlaneseq
      %v1496 = vshrl.u32 %v1495, 7
      %v1497 = vsub.s32 0, %v1496
      %v1498 = vrot.slane %v1493, %v1497
      %v1500 = vadd.f32 %v1489, %v1498
      %v1501 = vadd.f32 %v1490, %v1498
      %v1502 = vadd.f32 %v1491, %v1498
      %v1503 = vadd.f32 %v1492, %v1498
      %v1504 = vmax.f32 %v1500, 0.0
      %v1505 = vmax.f32 %v1501, 0.0
      %v1506 = vmax.f32 %v1502, 0.0
      %v1507 = vmax.f32 %v1503, 0.0
      %v1508 = vsel %vm1401, %v1504, 0.0
      %v1509 = vsel %vm1401, %v1505, 0.0
      %v1510 = vadd.f32 %v1508, %v1509
      %v1511 = vrot.slane %v1510, 4
      %v1512 = vadd.f32 %v1510, %v1511
      %v1513 = vrot.slane %v1512, 2
      %v1514 = vadd.f32 %v1512, %v1513
      %v1515 = vrot.slane %v1514, 1
      %v1516 = vadd.f32 %v1514, %v1515
      %v1517 = vsel %vm1401, %v1506, 0.0
      %v1518 = vsel %vm1401, %v1507, 0.0
      %v1519 = vadd.f32 %v1517, %v1518
      %v1520 = vrot.slane %v1519, 4
      %v1521 = vadd.f32 %v1519, %v1520
      %v1522 = vrot.slane %v1521, 2
      %v1523 = vadd.f32 %v1521, %v1522
      %v1524 = vrot.slane %v1523, 1
      %v1525 = vadd.f32 %v1523, %v1524
      %v1526 = vmul.f32 %v1516, 0.0625
      %v1527 = vmul.f32 %v1525, 0.0625
      %v1528 = vpack.c.bf16 %v1526, %v1526
      %v1529 = vpack.c.bf16 %v1527, %v1527
      %v1530 = vld [vmem:[%s14] sm:$0xf]
      %v1531 = vld [vmem:[%s14 + $0x4] sm:$0xf]
      %v1532 = vld [vmem:[%s14 + $0x8] sm:$0xf]
      %v1533 = vld [vmem:[%s14 + $0xc] sm:$0xf]
      %v1534 = vld [vmem:[%s14 + $0x10] sm:$0xf]
      %v1535 = vld [vmem:[%s14 + $0x14] sm:$0xf]
      %v1536 = vld [vmem:[%s14 + $0x18] sm:$0xf]
      %v1537 = vld [vmem:[%s14 + $0x1c] sm:$0xf]
      %v1538 = vld [vmem:[%s15] sm:$0x1]
      %v1540 = vlaneseq
      %v1541 = vshrl.u32 %v1540, 7
      %v1542 = vsub.s32 0, %v1541
      %v1543 = vrot.slane %v1538, %v1542
      %v1547 = vunpack.c.l.b16 %v1528
      %v1548 = vunpack.c.l.b16 %v1529
      %vm1549 = vcmask 1041409
      %v1550 = vsel %vm1549, %v1548, %v1547
      %v1551 = vpack.c.b16 %v1550, %v1550
      %v1560 = vunpack.c.l.b16 %v1530
      %v1561 = vunpack.c.l.b16 %v1531
      %v1562 = vunpack.c.l.b16 %v1532
      %v1563 = vunpack.c.l.b16 %v1533
      %v1564 = vunpack.c.l.b16 %v1534
      %v1565 = vunpack.c.l.b16 %v1535
      %v1566 = vunpack.c.l.b16 %v1536
      %v1567 = vunpack.c.l.b16 %v1537
      %v1568 = vpack.c.b16 %v1561, %v1560
      %v1569 = vpack.c.b16 %v1563, %v1562
      %v1570 = vpack.c.b16 %v1565, %v1564
      %v1571 = vpack.c.b16 %v1567, %v1566
      %v1577 = vsel %vm1401, %v1551, 0
      %1579 = vmatprep.subr.bf16.mxu0 0
      %1580 = vmatpush1.bf16.msra.mxu0 %v1568
      %1581 = vmatprep.subr.bf16.mxu0 0
      %1582 = vmatpush1.bf16.msra.mxu0 %v1569
      %1583 = vmatprep.subr.bf16.mxu0 0
      %1584 = vmatpush1.bf16.msra.mxu0 %v1570
      %1585 = vmatprep.subr.bf16.mxu0 0
      %1586 = vmatpush1.bf16.msra.mxu0 %v1571
      %1587 = vmatprep.subr.bf16.mxu0 0
      %1588 = vmatpush1.bf16.msra.mxu0 0
      %1589 = vmatprep.subr.bf16.mxu0 0
      %1590 = vmatpush1.bf16.msra.mxu0 0
      %1591 = vmatprep.subr.bf16.mxu0 0
      %1592 = vmatpush1.bf16.msra.mxu0 0
      %1593 = vmatprep.subr.bf16.mxu0 0
      %1594 = vmatpush1.bf16.msra.mxu0 0
      %1595 = vmatprep.subr.bf16.mxu0 0
      %1596 = vmatpush1.bf16.msra.mxu0 0
      %1597 = vmatprep.subr.bf16.mxu0 0
      %1598 = vmatpush1.bf16.msra.mxu0 0
      %1599 = vmatprep.subr.bf16.mxu0 0
      %1600 = vmatpush1.bf16.msra.mxu0 0
      %1601 = vmatprep.subr.bf16.mxu0 0
      %1602 = vmatpush1.bf16.msra.mxu0 0
      %1603 = vmatprep.subr.bf16.mxu0 0
      %1604 = vmatpush1.bf16.msra.mxu0 0
      %1605 = vmatprep.subr.bf16.mxu0 0
      %1606 = vmatpush1.bf16.msra.mxu0 0
      %1607 = vmatprep.subr.bf16.mxu0 0
      %1608 = vmatpush1.bf16.msra.mxu0 0
      %1609 = vmatprep.subr.bf16.mxu0 0
      %1610 = vmatpush1.bf16.msra.mxu0 0
      %1611 = vmatprep.mubr.bf16.mxu0 0
      %1612 = vmatmul.mubr.bf16.gmra.mrb[0].mxu0 %v1577
      %v1613 = vpop.f32.mrb[0].mxu0
      %v1614 = vadd.f32 %v1543, %v1613
      %v1615 = vpop.f32.mrb[0].mxu0
      %v1616 = vpop.f32.mrb[0].mxu0
      %v1617 = vpop.f32.mrb[0].mxu0
      %1618 = vdwg.mxu0
      %1619 = vst [vmem:[%s519] sm:$0x3] %v1614
      %p1620 = scmp.lt.s32.totalorder %s27, 1
      %s1621 = scalar_select %p1620, %s27, 1
      %s1622 = smul.addr %s1621, 2
      %s1623 = scalar_lea.vmem %s16, %s1622
      // Predicated region
      $region85: #{cnn_gnn_forward.1} parent=83 // pred_check
        %p1624 = pneg %p386
      $region86: #{cnn_gnn_forward.1} parent=83 // pred_check_branch
        %1626 = sbr.rel (%p1624) target = $region88
      $region87: #{cnn_gnn_forward.1} parent=83 // pred_region
        _
      $region88: #{cnn_gnn_forward.1} parent=83 // pred_fallthru
        _
    $region84: #{cnn_gnn_forward.1} parent=5 // pred_fallthru
      _
    %p1627 = scmp.le.s32.totalorder 2, %s22
    // Predicated region
    $region89: #{cnn_gnn_forward.1} parent=5 // pred_check
      %p1628 = pneg %p1627
    $region90: #{cnn_gnn_forward.1} parent=5 // pred_check_branch
      %1630 = sbr.rel (%p1628) target = $region92
    $region91: #{cnn_gnn_forward.1} parent=5 // pred_region
      %s1631 = ssub.s32 %s22, 2
      // Predicated region
      $region93: #{cnn_gnn_forward.1} parent=91 // pred_check
        %p1632 = pneg %p392
      $region94: #{cnn_gnn_forward.1} parent=91 // pred_check_branch
        %1634 = sbr.rel (%p1632) target = $region96
      $region95: #{cnn_gnn_forward.1} parent=91 // pred_region
        %p1635 = scmp.lt.s32.totalorder %s28, 1
        %s1636 = scalar_select %p1635, %s28, 1
        %s1637 = smul.addr %s1636, 2
        %s1638 = scalar_lea.vmem %s16, %s1637
      $region96: #{cnn_gnn_forward.1} parent=91 // pred_fallthru
        _
    $region92: #{cnn_gnn_forward.1} parent=5 // pred_fallthru
      _
  $region6: #{cnn_gnn_forward.1} parent=0 // loop_footer
    %s26 = sadd.s32 1, %s22
  $region7: #{cnn_gnn_forward.1} parent=0 // loop_footer_branch
    %21 = sbr.rel target = $region3
  $region8: #{cnn_gnn_forward.1} parent=0 // loop_exit
    _

</llo_original>
